<compile_context>
chip_gen: v5e
topology: v5e:2x2
jax: 0.10.0
libtpu: 0.0.40
codegen_flags: <defaults>
</compile_context>

<pallas_src>
import functools
import math

import jax
import jax.numpy as jnp
from jax import lax
from jax.experimental import pallas as pl
from jax.experimental.pallas import tpu as pltpu

_HALF_PI = 1.5707963267948966
_PI = 3.141592653589793
# theta_h / theta_d are normalized by (pi/180 * 89) in the k == 2 path
_ANGLE_SCALE_HD = 1.0 / (math.pi / 180.0 * 89.0)


def _round_up(x, m):
    return -(-x // m) * m


def _acos(x):
    # torch.acos replacement built only from sqrt/mul/add/select (inverse-trig
    # primitives do not lower in Mosaic).  Cephes-style minimax polynomial;
    # abs error ~1e-7 on the clamped range |x| <= 1 - 1e-7.
    a = jnp.abs(x)
    small = a <= 0.5
    z_large = 0.5 * (1.0 - a)
    z = jnp.where(small, x * x, z_large)
    s = jnp.where(small, x, jnp.sqrt(z_large))
    p = ((((4.2163199048e-2 * z + 2.4181311049e-2) * z + 4.5470025998e-2) * z
          + 7.4953002686e-2) * z + 1.6666752422e-1)
    asin_core = s + s * z * p
    acos_small = _HALF_PI - asin_core
    w = 2.0 * asin_core
    acos_large = jnp.where(x > 0.0, w, _PI - w)
    return jnp.where(small, acos_small, acos_large)


def _merl_shading_kernel(params_ref, points_ref, normals_ref, mats_ref, tex_ref,
                         out_ref, *, th, td, th_pad, td_pad, n_basis, mxu_dtype):
    b = pl.program_id(0)

    pts = points_ref[0]          # (3, TP)   pixel coords, pixels on lanes
    nrm = normals_ref[0]         # (3, TP)   pixel normals (unnormalized)
    tex = tex_ref[0]             # (nb, TP)  per-pixel basis weights

    # scalar light / camera parameters live in SMEM: [loc(3), diffuse(3), cam(3)]
    lox, loy, loz = params_ref[b, 0], params_ref[b, 1], params_ref[b, 2]
    dif = (params_ref[b, 3], params_ref[b, 4], params_ref[b, 5])
    cx, cy, cz = params_ref[b, 6], params_ref[b, 7], params_ref[b, 8]

    px, py, pz = pts[0:1, :], pts[1:2, :], pts[2:3, :]
    nx, ny, nz = nrm[0:1, :], nrm[1:2, :], nrm[2:3, :]

    # PointLights: light_dir = location - points ; view_dir = camera - points
    ldx, ldy, ldz = lox - px, loy - py, loz - pz
    vdx, vdy, vdz = cx - px, cy - py, cz - pz

    # normalize via EUP rsqrt (no sqrt + divide on the VALU critical path)
    n2 = nx * nx + ny * ny + nz * nz
    l2 = ldx * ldx + ldy * ldy + ldz * ldz
    v2 = vdx * vdx + vdy * vdy + vdz * vdz
    inv_n = lax.rsqrt(jnp.maximum(n2, 1e-24))
    inv_l = lax.rsqrt(jnp.maximum(l2, 1e-24))
    inv_v = lax.rsqrt(jnp.maximum(v2, 1e-24))
    nx_, ny_, nz_ = nx * inv_n, ny * inv_n, nz * inv_n
    lx_, ly_, lz_ = ldx * inv_l, ldy * inv_l, ldz * inv_l
    vx_, vy_, vz_ = vdx * inv_v, vdy * inv_v, vdz * inv_v

    # Rusinkiewicz angles (brdf_nd = 2 -> theta_h, theta_d)
    hx, hy, hz = lx_ + vx_, ly_ + vy_, lz_ + vz_
    inv_h = lax.rsqrt(jnp.maximum(hx * hx + hy * hy + hz * hz, 1e-24))
    clip = lambda c: jnp.clip(c, -1.0 + 1e-7, 1.0 - 1e-7)
    cos_th = (hx * nx_ + hy * ny_ + hz * nz_) * inv_h
    cos_td = lx_ * vx_ + ly_ * vy_ + lz_ * vz_
    theta_h = _acos(clip(cos_th))                       # (1, TP)
    theta_d = _acos(clip(cos_td)) * 0.5                 # (1, TP)

    falloff = nx_ * lx_ + ny_ * ly_ + nz_ * lz_
    nv_raw = nx * vdx + ny * vdy + nz * vdz             # raw normals . raw view dirs
    falloff = jnp.where((falloff > 0.0) & (nv_raw > 0.0), falloff, 0.0)

    # shared per-pixel scale: falloff / max(|light_dir|^2, eps)  (EUP reciprocal)
    r2 = jnp.maximum(l2, 1e-12)
    scale = falloff * pl.reciprocal(r2, approx=True)    # (1, TP)

    # --- stage 1 (MXU): contract basis and theta_h in one matmul ---------------
    # grid_sample(bilinear, zeros, align_corners=True) weights are separable hat
    # functions w(r, x) = max(0, 1 - |r - x|).  RHS rows are indexed (basis major,
    # theta_h minor): rhs[b*TH_pad + r, p] = tex[b, p] * w_h[r, p].  Padded theta_h
    # rows multiply zero LHS columns, so they contribute nothing.
    ih = theta_h * (_ANGLE_SCALE_HD * (th - 1))          # float theta_h grid coord
    rid = lax.broadcasted_iota(jnp.int32, (th_pad, 1), 0).astype(jnp.float32)
    w_h = jnp.maximum(0.0, 1.0 - jnp.abs(rid - ih))      # (TH_pad, TP) f32
    rhs = jnp.concatenate([tex[i:i + 1, :] * w_h for i in range(n_basis)],
                          axis=0).astype(mxu_dtype)      # (nb*TH_pad, TP)
    # LHS rows are (channel major, theta_d minor) with 16-row channel blocks:
    # tmp[c*TD_pad + col, p] = sum_{b,r} M[b,c,r,col] * tex[b,p] * w_h[r,p]
    tmp = jnp.dot(mats_ref[0], rhs, preferred_element_type=jnp.float32)

    # --- stage 2 (VALU): theta_d hat factor + per-channel epilogue -------------
    idd = theta_d * (_ANGLE_SCALE_HD * (td - 1))         # float theta_d grid coord
    cid = lax.broadcasted_iota(jnp.int32, (td_pad, 1), 0).astype(jnp.float32)
    w_d = jnp.maximum(0.0, 1.0 - jnp.abs(cid - idd))     # (TD_pad, TP) f32

    rows = []
    for c in range(3):
        tmp_c = tmp[c * td_pad:(c + 1) * td_pad, :]      # 16-row aligned slice
        refl_c = jnp.sum(tmp_c * w_d, axis=0, keepdims=True)        # (1, TP)
        rows.append(refl_c * (scale * dif[c]))                      # (1, TP)
    out_ref[0] = jnp.concatenate(rows, axis=0).astype(out_ref.dtype)


def _vmem_capacity_bytes():
    try:
        return int(pltpu.get_tpu_info().vmem_capacity_bytes)
    except Exception:
        return 64 << 20  # conservative (v7x-class) fallback


def _tile_and_vmem(p, n, n_basis, th_pad, td_pad, mxu_itemsize, tile_override=None):
    """Generation-aware pixel tile + VMEM limit.

    v7x-class chips (64 MiB VMEM, 2 TensorCores): tighter budget, keep >=2 work
    items when batch==1.  v5e/v6e (128 MiB VMEM, 1 TC): bigger tiles, no split."""
    vmem_cap = _vmem_capacity_bytes()
    small_vmem = vmem_cap <= (72 << 20)
    budget = (22 << 20) if small_vmem else (48 << 20)
    limit_cap = (40 << 20) if small_vmem else (96 << 20)

    mats_bytes = 3 * td_pad * n_basis * th_pad * mxu_itemsize
    per_px = (2 * (3 + 3 + n_basis + 3) * 4                  # double-buffered f32 IO
              + (th_pad + td_pad + 3 * td_pad + 64) * 4      # hat factors, matmul out, misc
              + n_basis * th_pad * (2 * 4 + mxu_itemsize))   # rhs build (f32) + bf16 copy
    fixed = 2 * mats_bytes + (1 << 20)

    if tile_override is not None:
        tile = int(tile_override)
    else:
        cap = max(256, (budget - fixed) // per_px)
        tile = max(256, int(min(2048, cap)) // 256 * 256)    # floor 256, prefer 512+
        tile = min(tile, _round_up(p, 256))                  # never bigger than needed
        if small_vmem and n < 2:                             # keep both v7x TCs busy
            while tile > 256 and -(-p // tile) < 2:
                tile = max(256, (tile // 2) // 256 * 256)

    vmem_limit = int(min(limit_cap, max(32 << 20, 2 * (fixed + tile * per_px))))
    return tile, vmem_limit


def apply_lighting_pallas(points, normals, light_location, light_diffuse,
                          camera_center, materials, textures,
                          tile_p=None, matmul_dtype=jnp.bfloat16):
    """Pallas version of _apply_lighting (PointLights, brdf_nd=2).

    points/normals: (N, P, 3); textures: (N, P, n_basis);
    materials: (N, n_basis, 3, TH, TD); returns shading colors (N, P, 3).
    """
    n, p, _ = points.shape
    n_basis, n_ch, th, td = materials.shape[1:]
    assert n_ch == 3

    th_pad = _round_up(th, 16)   # MXU K sub-block (bf16 sublane packing)
    td_pad = _round_up(td, 16)   # per-channel M block (aligned stage-2 slices)

    # Two-stage-contraction LHS: rows = (channel, theta_d), cols = (basis, theta_h)
    # LHS[c*TD_pad + col, b*TH_pad + r] = materials[n, b, c, r, col]
    mats = jnp.transpose(materials.astype(jnp.float32), (0, 2, 4, 1, 3))  # (N,3,TD,nb,TH)
    mats = jnp.pad(mats, ((0, 0), (0, 0), (0, td_pad - td), (0, 0), (0, th_pad - th)))
    mats = mats.reshape(n, 3 * td_pad, n_basis * th_pad).astype(matmul_dtype)

    # pixel axis last (lanes): (N, 3, P) / (N, n_basis, P)  — layout plumbing only
    pts_t = jnp.transpose(points.astype(jnp.float32), (0, 2, 1))
    nrm_t = jnp.transpose(normals.astype(jnp.float32), (0, 2, 1))
    tex_t = jnp.transpose(textures.astype(jnp.float32), (0, 2, 1))

    # light / camera scalars -> one (N, 9) SMEM table: [loc(3), diffuse(3), cam(3)]
    cam = jnp.broadcast_to(jnp.asarray(camera_center, jnp.float32).reshape(1, 3), (n, 3))
    params = jnp.concatenate([light_location.reshape(n, 3).astype(jnp.float32),
                              light_diffuse.reshape(n, 3).astype(jnp.float32),
                              cam], axis=1)

    itemsize = jnp.dtype(matmul_dtype).itemsize
    tile_p, vmem_limit = _tile_and_vmem(p, n, n_basis, th_pad, td_pad, itemsize,
                                        tile_override=tile_p)

    pad = (-p) % tile_p
    if pad:
        pts_t = jnp.pad(pts_t, ((0, 0), (0, 0), (0, pad)))
        nrm_t = jnp.pad(nrm_t, ((0, 0), (0, 0), (0, pad)))
        tex_t = jnp.pad(tex_t, ((0, 0), (0, 0), (0, pad)))
    p_pad = p + pad

    kernel = functools.partial(_merl_shading_kernel, th=th, td=td, th_pad=th_pad,
                               td_pad=td_pad, n_basis=n_basis, mxu_dtype=matmul_dtype)
    out = pl.pallas_call(
        kernel,
        out_shape=jax.ShapeDtypeStruct((n, 3, p_pad), jnp.float32),
        grid_spec=pltpu.PrefetchScalarGridSpec(
            num_scalar_prefetch=0,
            grid=(n, p_pad // tile_p),
            in_specs=[
                pl.BlockSpec(memory_space=pltpu.MemorySpace.SMEM),           # light/cam scalars
                pl.BlockSpec((1, 3, tile_p), lambda i, t: (i, 0, t)),        # points
                pl.BlockSpec((1, 3, tile_p), lambda i, t: (i, 0, t)),        # normals
                pl.BlockSpec((1, 3 * td_pad, n_basis * th_pad),
                             lambda i, t: (i, 0, 0)),                        # materials LHS
                pl.BlockSpec((1, n_basis, tile_p), lambda i, t: (i, 0, t)),  # textures
            ],
            out_specs=pl.BlockSpec((1, 3, tile_p), lambda i, t: (i, 0, t)),
        ),
        compiler_params=pltpu.CompilerParams(
            dimension_semantics=("parallel", "parallel"),
            vmem_limit_bytes=vmem_limit),
    )(params, pts_t, nrm_t, mats, tex_t)

    # back to (N, P, 3) for the blend glue (padded tail pixels are zero)
    return jnp.transpose(out[:, :, :p], (0, 2, 1))


# ---------------- pure-JAX f32 reference (for the correctness check) ----------------

def _apply_lighting_ref(points, normals, light_location, light_diffuse,
                        camera_center, materials, textures):
    th, td = materials.shape[-2:]
    normalize = lambda v: v / jnp.maximum(jnp.linalg.norm(v, axis=-1, keepdims=True), 1e-12)
    light_dirs = light_location[:, None, :] - points
    view_dirs = jnp.reshape(camera_center, (1, 1, 3)) - points
    n_, l_, v_ = normalize(normals), normalize(light_dirs), normalize(view_dirs)
    h = normalize(l_ + v_)
    clip = lambda c: jnp.clip(c, -1.0 + 1e-7, 1.0 - 1e-7)
    theta_h = jnp.arccos(clip(jnp.sum(h * n_, -1)))
    theta_d = jnp.arccos(clip(jnp.sum(l_ * v_, -1))) * 0.5
    falloff = jnp.sum(n_ * l_, -1)
    visible = (falloff > 0) & (jnp.sum(normals * view_dirs, -1) > 0)
    falloff = jnp.where(visible, falloff, 0.0)
    # grid_sample(bilinear, padding zeros, align_corners=True) as separable hats
    hc = theta_h * _ANGLE_SCALE_HD * (th - 1)
    dc = theta_d * _ANGLE_SCALE_HD * (td - 1)
    w_h = jnp.maximum(0.0, 1.0 - jnp.abs(jnp.arange(th)[None, None, :] - hc[..., None]))
    w_d = jnp.maximum(0.0, 1.0 - jnp.abs(jnp.arange(td)[None, None, :] - dc[..., None]))
    interp = jnp.einsum('nbcrd,npr,npd->npbc', materials, w_h, w_d,
                        precision=lax.Precision.HIGHEST)
    refl = jnp.einsum('npbc,npb->npc', interp, textures,
                      precision=lax.Precision.HIGHEST)
    r2 = jnp.maximum(jnp.sum(light_dirs * light_dirs, -1, keepdims=True), 1e-12)
    return refl * falloff[..., None] * light_diffuse[:, None, :] / r2


# ---------------- plain-JAX glue (rasterizer-side, not the hot path) ----------------

def interpolate_face_attributes(pix_to_face, bary_coords, face_attrs):
    # pytorch3d.ops.interpolate_face_attributes: gather + barycentric sum.
    mask = pix_to_face < 0
    idx = jnp.where(mask, 0, pix_to_face)
    vals = face_attrs[idx]                                    # (N,H,W,K,3,D)
    out = jnp.sum(bary_coords[..., None] * vals, axis=-2)     # (N,H,W,K,D)
    return jnp.where(mask[..., None], 0.0, out)


def softmax_rgb_blend(colors, pix_to_face, dists, zbuf,
                      sigma=1e-4, gamma=1e-4, background_color=(1.0, 1.0, 1.0),
                      znear=1.0, zfar=100.0):
    # pytorch3d.renderer.blending.softmax_rgb_blend (plain-JAX glue).
    eps = 1e-10
    mask = (pix_to_face >= 0).astype(colors.dtype)
    prob_map = jax.nn.sigmoid(-dists / sigma) * mask
    alpha = 1.0 - jnp.prod(1.0 - prob_map, axis=-1, keepdims=True)      # (N,H,W,1)
    z_inv = (zfar - zbuf) / (zfar - znear) * mask
    z_inv_max = jnp.maximum(jnp.max(z_inv, axis=-1, keepdims=True), eps)
    weights_num = prob_map * jnp.exp((z_inv - z_inv_max) / gamma)
    delta = jnp.exp((eps - z_inv_max) / gamma)
    denom = jnp.sum(weights_num, axis=-1, keepdims=True) + delta
    weighted_colors = jnp.sum((weights_num / denom)[..., None] * colors, axis=-2)
    weighted_background = (delta / denom) * jnp.asarray(background_color, colors.dtype)
    rgb = weighted_colors + weighted_background
    return jnp.concatenate([rgb, alpha], axis=-1)                       # (N,H,W,4)


def soft_merl_shader_forward(pix_to_face, bary_coords, dists, zbuf,
                             verts, faces, verts_normals, texels,
                             light_location, light_diffuse, camera_center,
                             materials):
    """JAX/Pallas equivalent of SoftMerlShader.forward (PointLights, brdf_nd=2)."""
    # TODO(synk): meshes.sample_textures is pytorch3d-specific; per-pixel basis
    # weights (`texels`) are taken directly as an input tensor here.
    n, h, w, k = pix_to_face.shape
    faces_verts = verts[faces]               # (F, 3, 3)
    faces_normals = verts_normals[faces]     # (F, 3, 3)
    pixel_coords = interpolate_face_attributes(pix_to_face, bary_coords, faces_verts)
    pixel_normals = interpolate_face_attributes(pix_to_face, bary_coords, faces_normals)
    p = h * w * k
    pixel_coords = pixel_coords.reshape(n, p, 3)
    pixel_normals = pixel_normals.reshape(n, p, 3)
    textures = texels.reshape(n, p, -1)
    shading = apply_lighting_pallas(pixel_coords, pixel_normals, light_location,
                                    light_diffuse, camera_center, materials, textures)
    colors = shading.reshape(n, h, w, k, 3)          # merl_shading output
    return softmax_rgb_blend(colors, pix_to_face, dists, zbuf)


if __name__ == "__main__":
    key = jax.random.PRNGKey(0)
    N, H, W, K = 2, 16, 16, 2         # batch, image, faces-per-pixel -> P = 512
    V, F = 12, 6                      # vertices, faces
    n_basis, TH, TD = 4, 16, 16       # MERL basis count and angular grid

    ks = jax.random.split(key, 14)
    verts = jax.random.normal(ks[0], (V, 3), jnp.float32)
    faces = jax.random.randint(ks[1], (F, 3), 0, V)
    verts_normals = jax.random.normal(ks[2], (V, 3), jnp.float32)

    pix_to_face = jax.random.randint(ks[3], (N, H, W, K), -1, F)   # -1 = background
    bary = jax.random.uniform(ks[4], (N, H, W, K, 3), jnp.float32, 0.1, 1.0)
    bary_coords = bary / jnp.sum(bary, axis=-1, keepdims=True)
    dists = jax.random.uniform(ks[5], (N, H, W, K), jnp.float32, -1e-4, 1e-4)
    zbuf = jax.random.uniform(ks[6], (N, H, W, K), jnp.float32, 1.0, 10.0)

    texels = jax.random.uniform(ks[7], (N, H, W, K, n_basis), jnp.float32)
    light_location = 2.0 * jax.random.normal(ks[8], (N, 3), jnp.float32)
    light_diffuse = jnp.ones((N, 3), jnp.float32)
    camera_center = jnp.array([0.0, 0.0, 5.0], jnp.float32)
    materials = jax.random.uniform(ks[9], (N, n_basis, 3, TH, TD), jnp.float32)

    # --- correctness check: Pallas shading vs pure-JAX f32 reference ---
    P = H * W * K
    pts_chk = jax.random.normal(ks[10], (N, P, 3), jnp.float32)
    nrm_chk = jax.random.normal(ks[11], (N, P, 3), jnp.float32)
    tex_chk = jax.random.uniform(ks[12], (N, P, n_basis), jnp.float32)
    got = apply_lighting_pallas(pts_chk, nrm_chk, light_location, light_diffuse,
                                camera_center, materials, tex_chk)
    want = _apply_lighting_ref(pts_chk, nrm_chk, light_location, light_diffuse,
                               camera_center, materials, tex_chk)
    got, want = jax.block_until_ready((got, want))
    err = float(jnp.max(jnp.abs(got - want)))
    ref_scale = float(jnp.max(jnp.abs(want))) + 1e-6
    assert err <= 3e-2 * ref_scale + 1e-4, (err, ref_scale)

    # --- full forward pass ---
    images = soft_merl_shader_forward(pix_to_face, bary_coords, dists, zbuf,
                                      verts, faces, verts_normals, texels,
                                      light_location, light_diffuse,
                                      camera_center, materials)
    images = jax.block_until_ready(images)
    assert images.shape == (N, H, W, 4)
    print("KERNEL_OK")
</pallas_src>

<mosaic_0001>
module attributes {stable_mosaic.version = 11 : i64} {
  func.func @_merl_shading_kernel(%arg0: i32, %arg1: i32, %arg2: memref<2x9xf32, #tpu.memory_space<smem>>, %arg3: memref<1x3x512xf32, #tpu.memory_space<vmem>>, %arg4: memref<1x3x512xf32, #tpu.memory_space<vmem>>, %arg5: memref<1x48x64xbf16, #tpu.memory_space<vmem>>, %arg6: memref<1x4x512xf32, #tpu.memory_space<vmem>>, %arg7: memref<1x3x512xf32, #tpu.memory_space<vmem>>) attributes {dimension_semantics = [#tpu.dimension_semantics<parallel>, #tpu.dimension_semantics<parallel>], iteration_bounds = array<i64: 2, 1>, scalar_prefetch = 0 : i64, scratch_operands = 0 : i64, tpu.core_type = #tpu.core_type<tc>, window_params = [{transform_indices = @transform_0, window_bounds = array<i64: 2, 9>}, {transform_indices = @transform_1, window_bounds = array<i64: 1, 3, 512>}, {transform_indices = @transform_2, window_bounds = array<i64: 1, 3, 512>}, {transform_indices = @transform_3, window_bounds = array<i64: 1, 48, 64>}, {transform_indices = @transform_4, window_bounds = array<i64: 1, 4, 512>}, {transform_indices = @transform_5, window_bounds = array<i64: 1, 3, 512>}]} {
    %c0 = arith.constant 0 : index
    %c0_0 = arith.constant 0 : index
    %c0_1 = arith.constant 0 : index
    %0 = vector.load %arg3[%c0, %c0_0, %c0_1] : memref<1x3x512xf32, #tpu.memory_space<vmem>>, vector<1x3x512xf32>
    %1 = vector.shape_cast %0 : vector<1x3x512xf32> to vector<3x512xf32>
    %c0_2 = arith.constant 0 : index
    %c0_3 = arith.constant 0 : index
    %c0_4 = arith.constant 0 : index
    %2 = vector.load %arg4[%c0_2, %c0_3, %c0_4] : memref<1x3x512xf32, #tpu.memory_space<vmem>>, vector<1x3x512xf32>
    %3 = vector.shape_cast %2 : vector<1x3x512xf32> to vector<3x512xf32>
    %c0_5 = arith.constant 0 : index
    %c0_6 = arith.constant 0 : index
    %c0_7 = arith.constant 0 : index
    %4 = vector.load %arg6[%c0_5, %c0_6, %c0_7] : memref<1x4x512xf32, #tpu.memory_space<vmem>>, vector<1x4x512xf32>
    %5 = vector.shape_cast %4 : vector<1x4x512xf32> to vector<4x512xf32>
    %6 = arith.index_cast %arg0 : i32 to index
    %c0_8 = arith.constant 0 : index
    %7 = memref.load %arg2[%6, %c0_8] : memref<2x9xf32, #tpu.memory_space<smem>>
    %8 = arith.index_cast %arg0 : i32 to index
    %c1 = arith.constant 1 : index
    %9 = memref.load %arg2[%8, %c1] : memref<2x9xf32, #tpu.memory_space<smem>>
    %10 = arith.index_cast %arg0 : i32 to index
    %c2 = arith.constant 2 : index
    %11 = memref.load %arg2[%10, %c2] : memref<2x9xf32, #tpu.memory_space<smem>>
    %12 = arith.index_cast %arg0 : i32 to index
    %c3 = arith.constant 3 : index
    %13 = memref.load %arg2[%12, %c3] : memref<2x9xf32, #tpu.memory_space<smem>>
    %14 = arith.index_cast %arg0 : i32 to index
    %c4 = arith.constant 4 : index
    %15 = memref.load %arg2[%14, %c4] : memref<2x9xf32, #tpu.memory_space<smem>>
    %16 = arith.index_cast %arg0 : i32 to index
    %c5 = arith.constant 5 : index
    %17 = memref.load %arg2[%16, %c5] : memref<2x9xf32, #tpu.memory_space<smem>>
    %18 = arith.index_cast %arg0 : i32 to index
    %c6 = arith.constant 6 : index
    %19 = memref.load %arg2[%18, %c6] : memref<2x9xf32, #tpu.memory_space<smem>>
    %20 = arith.index_cast %arg0 : i32 to index
    %c7 = arith.constant 7 : index
    %21 = memref.load %arg2[%20, %c7] : memref<2x9xf32, #tpu.memory_space<smem>>
    %22 = arith.index_cast %arg0 : i32 to index
    %c8 = arith.constant 8 : index
    %23 = memref.load %arg2[%22, %c8] : memref<2x9xf32, #tpu.memory_space<smem>>
    %24 = vector.extract_strided_slice %1 {offsets = [0, 0], sizes = [1, 512], strides = [1, 1]} : vector<3x512xf32> to vector<1x512xf32>
    %25 = vector.extract_strided_slice %1 {offsets = [1, 0], sizes = [1, 512], strides = [1, 1]} : vector<3x512xf32> to vector<1x512xf32>
    %26 = vector.extract_strided_slice %1 {offsets = [2, 0], sizes = [1, 512], strides = [1, 1]} : vector<3x512xf32> to vector<1x512xf32>
    %27 = vector.extract_strided_slice %3 {offsets = [0, 0], sizes = [1, 512], strides = [1, 1]} : vector<3x512xf32> to vector<1x512xf32>
    %28 = vector.extract_strided_slice %3 {offsets = [1, 0], sizes = [1, 512], strides = [1, 1]} : vector<3x512xf32> to vector<1x512xf32>
    %29 = vector.extract_strided_slice %3 {offsets = [2, 0], sizes = [1, 512], strides = [1, 1]} : vector<3x512xf32> to vector<1x512xf32>
    %30 = vector.broadcast %7 : f32 to vector<1x512xf32>
    %31 = arith.subf %30, %24 : vector<1x512xf32>
    %32 = vector.broadcast %9 : f32 to vector<1x512xf32>
    %33 = arith.subf %32, %25 : vector<1x512xf32>
    %34 = vector.broadcast %11 : f32 to vector<1x512xf32>
    %35 = arith.subf %34, %26 : vector<1x512xf32>
    %36 = vector.broadcast %19 : f32 to vector<1x512xf32>
    %37 = arith.subf %36, %24 : vector<1x512xf32>
    %38 = vector.broadcast %21 : f32 to vector<1x512xf32>
    %39 = arith.subf %38, %25 : vector<1x512xf32>
    %40 = vector.broadcast %23 : f32 to vector<1x512xf32>
    %41 = arith.subf %40, %26 : vector<1x512xf32>
    %42 = arith.mulf %27, %27 : vector<1x512xf32>
    %43 = arith.mulf %28, %28 : vector<1x512xf32>
    %44 = arith.addf %42, %43 : vector<1x512xf32>
    %45 = arith.mulf %29, %29 : vector<1x512xf32>
    %46 = arith.addf %44, %45 : vector<1x512xf32>
    %47 = arith.mulf %31, %31 : vector<1x512xf32>
    %48 = arith.mulf %33, %33 : vector<1x512xf32>
    %49 = arith.addf %47, %48 : vector<1x512xf32>
    %50 = arith.mulf %35, %35 : vector<1x512xf32>
    %51 = arith.addf %49, %50 : vector<1x512xf32>
    %52 = arith.mulf %37, %37 : vector<1x512xf32>
    %53 = arith.mulf %39, %39 : vector<1x512xf32>
    %54 = arith.addf %52, %53 : vector<1x512xf32>
    %55 = arith.mulf %41, %41 : vector<1x512xf32>
    %56 = arith.addf %54, %55 : vector<1x512xf32>
    %cst = arith.constant 1.000000e-24 : f32
    %57 = vector.broadcast %cst : f32 to vector<1x512xf32>
    %58 = arith.maximumf %46, %57 : vector<1x512xf32>
    %59 = math.rsqrt %58 : vector<1x512xf32>
    %cst_9 = arith.constant 1.000000e-24 : f32
    %60 = vector.broadcast %cst_9 : f32 to vector<1x512xf32>
    %61 = arith.maximumf %51, %60 : vector<1x512xf32>
    %62 = math.rsqrt %61 : vector<1x512xf32>
    %cst_10 = arith.constant 1.000000e-24 : f32
    %63 = vector.broadcast %cst_10 : f32 to vector<1x512xf32>
    %64 = arith.maximumf %56, %63 : vector<1x512xf32>
    %65 = math.rsqrt %64 : vector<1x512xf32>
    %66 = arith.mulf %27, %59 : vector<1x512xf32>
    %67 = arith.mulf %28, %59 : vector<1x512xf32>
    %68 = arith.mulf %29, %59 : vector<1x512xf32>
    %69 = arith.mulf %31, %62 : vector<1x512xf32>
    %70 = arith.mulf %33, %62 : vector<1x512xf32>
    %71 = arith.mulf %35, %62 : vector<1x512xf32>
    %72 = arith.mulf %37, %65 : vector<1x512xf32>
    %73 = arith.mulf %39, %65 : vector<1x512xf32>
    %74 = arith.mulf %41, %65 : vector<1x512xf32>
    %75 = arith.addf %69, %72 : vector<1x512xf32>
    %76 = arith.addf %70, %73 : vector<1x512xf32>
    %77 = arith.addf %71, %74 : vector<1x512xf32>
    %78 = arith.mulf %75, %75 : vector<1x512xf32>
    %79 = arith.mulf %76, %76 : vector<1x512xf32>
    %80 = arith.addf %78, %79 : vector<1x512xf32>
    %81 = arith.mulf %77, %77 : vector<1x512xf32>
    %82 = arith.addf %80, %81 : vector<1x512xf32>
    %cst_11 = arith.constant 1.000000e-24 : f32
    %83 = vector.broadcast %cst_11 : f32 to vector<1x512xf32>
    %84 = arith.maximumf %82, %83 : vector<1x512xf32>
    %85 = math.rsqrt %84 : vector<1x512xf32>
    %86 = arith.mulf %75, %66 : vector<1x512xf32>
    %87 = arith.mulf %76, %67 : vector<1x512xf32>
    %88 = arith.addf %86, %87 : vector<1x512xf32>
    %89 = arith.mulf %77, %68 : vector<1x512xf32>
    %90 = arith.addf %88, %89 : vector<1x512xf32>
    %91 = arith.mulf %90, %85 : vector<1x512xf32>
    %92 = arith.mulf %69, %72 : vector<1x512xf32>
    %93 = arith.mulf %70, %73 : vector<1x512xf32>
    %94 = arith.addf %92, %93 : vector<1x512xf32>
    %95 = arith.mulf %71, %74 : vector<1x512xf32>
    %96 = arith.addf %94, %95 : vector<1x512xf32>
    %cst_12 = arith.constant -0.99999988 : f32
    %cst_13 = arith.constant 0.99999988 : f32
    %97 = vector.broadcast %cst_12 : f32 to vector<1x512xf32>
    %98 = arith.maximumf %97, %91 : vector<1x512xf32>
    %99 = vector.broadcast %cst_13 : f32 to vector<1x512xf32>
    %100 = arith.minimumf %99, %98 : vector<1x512xf32>
    %101 = math.absf %100 : vector<1x512xf32>
    %cst_14 = arith.constant 5.000000e-01 : f32
    %102 = vector.broadcast %cst_14 : f32 to vector<1x512xf32>
    %103 = arith.cmpf ole, %101, %102 : vector<1x512xf32>
    %cst_15 = arith.constant 1.000000e+00 : f32
    %104 = vector.broadcast %cst_15 : f32 to vector<1x512xf32>
    %105 = arith.subf %104, %101 : vector<1x512xf32>
    %cst_16 = arith.constant 5.000000e-01 : f32
    %106 = vector.broadcast %cst_16 : f32 to vector<1x512xf32>
    %107 = arith.mulf %106, %105 : vector<1x512xf32>
    %108 = arith.mulf %100, %100 : vector<1x512xf32>
    %109 = arith.select %103, %108, %107 : vector<1x512xi1>, vector<1x512xf32>
    %110 = math.sqrt %107 : vector<1x512xf32>
    %111 = arith.select %103, %100, %110 : vector<1x512xi1>, vector<1x512xf32>
    %cst_17 = arith.constant 4.216320e-02 : f32
    %112 = vector.broadcast %cst_17 : f32 to vector<1x512xf32>
    %113 = arith.mulf %112, %109 : vector<1x512xf32>
    %cst_18 = arith.constant 0.024181312 : f32
    %114 = vector.broadcast %cst_18 : f32 to vector<1x512xf32>
    %115 = arith.addf %113, %114 : vector<1x512xf32>
    %116 = arith.mulf %115, %109 : vector<1x512xf32>
    %cst_19 = arith.constant 0.0454700254 : f32
    %117 = vector.broadcast %cst_19 : f32 to vector<1x512xf32>
    %118 = arith.addf %116, %117 : vector<1x512xf32>
    %119 = arith.mulf %118, %109 : vector<1x512xf32>
    %cst_20 = arith.constant 0.0749530047 : f32
    %120 = vector.broadcast %cst_20 : f32 to vector<1x512xf32>
    %121 = arith.addf %119, %120 : vector<1x512xf32>
    %122 = arith.mulf %121, %109 : vector<1x512xf32>
    %cst_21 = arith.constant 0.166667521 : f32
    %123 = vector.broadcast %cst_21 : f32 to vector<1x512xf32>
    %124 = arith.addf %122, %123 : vector<1x512xf32>
    %125 = arith.mulf %111, %109 : vector<1x512xf32>
    %126 = arith.mulf %125, %124 : vector<1x512xf32>
    %127 = arith.addf %111, %126 : vector<1x512xf32>
    %cst_22 = arith.constant 1.57079637 : f32
    %128 = vector.broadcast %cst_22 : f32 to vector<1x512xf32>
    %129 = arith.subf %128, %127 : vector<1x512xf32>
    %cst_23 = arith.constant 2.000000e+00 : f32
    %130 = vector.broadcast %cst_23 : f32 to vector<1x512xf32>
    %131 = arith.mulf %130, %127 : vector<1x512xf32>
    %cst_24 = arith.constant 0.000000e+00 : f32
    %132 = vector.broadcast %cst_24 : f32 to vector<1x512xf32>
    %133 = arith.cmpf ogt, %100, %132 : vector<1x512xf32>
    %cst_25 = arith.constant 3.14159274 : f32
    %134 = vector.broadcast %cst_25 : f32 to vector<1x512xf32>
    %135 = arith.subf %134, %131 : vector<1x512xf32>
    %136 = arith.select %133, %131, %135 : vector<1x512xi1>, vector<1x512xf32>
    %137 = arith.select %103, %129, %136 : vector<1x512xi1>, vector<1x512xf32>
    %cst_26 = arith.constant -0.99999988 : f32
    %cst_27 = arith.constant 0.99999988 : f32
    %138 = vector.broadcast %cst_26 : f32 to vector<1x512xf32>
    %139 = arith.maximumf %138, %96 : vector<1x512xf32>
    %140 = vector.broadcast %cst_27 : f32 to vector<1x512xf32>
    %141 = arith.minimumf %140, %139 : vector<1x512xf32>
    %142 = math.absf %141 : vector<1x512xf32>
    %cst_28 = arith.constant 5.000000e-01 : f32
    %143 = vector.broadcast %cst_28 : f32 to vector<1x512xf32>
    %144 = arith.cmpf ole, %142, %143 : vector<1x512xf32>
    %cst_29 = arith.constant 1.000000e+00 : f32
    %145 = vector.broadcast %cst_29 : f32 to vector<1x512xf32>
    %146 = arith.subf %145, %142 : vector<1x512xf32>
    %cst_30 = arith.constant 5.000000e-01 : f32
    %147 = vector.broadcast %cst_30 : f32 to vector<1x512xf32>
    %148 = arith.mulf %147, %146 : vector<1x512xf32>
    %149 = arith.mulf %141, %141 : vector<1x512xf32>
    %150 = arith.select %144, %149, %148 : vector<1x512xi1>, vector<1x512xf32>
    %151 = math.sqrt %148 : vector<1x512xf32>
    %152 = arith.select %144, %141, %151 : vector<1x512xi1>, vector<1x512xf32>
    %cst_31 = arith.constant 4.216320e-02 : f32
    %153 = vector.broadcast %cst_31 : f32 to vector<1x512xf32>
    %154 = arith.mulf %153, %150 : vector<1x512xf32>
    %cst_32 = arith.constant 0.024181312 : f32
    %155 = vector.broadcast %cst_32 : f32 to vector<1x512xf32>
    %156 = arith.addf %154, %155 : vector<1x512xf32>
    %157 = arith.mulf %156, %150 : vector<1x512xf32>
    %cst_33 = arith.constant 0.0454700254 : f32
    %158 = vector.broadcast %cst_33 : f32 to vector<1x512xf32>
    %159 = arith.addf %157, %158 : vector<1x512xf32>
    %160 = arith.mulf %159, %150 : vector<1x512xf32>
    %cst_34 = arith.constant 0.0749530047 : f32
    %161 = vector.broadcast %cst_34 : f32 to vector<1x512xf32>
    %162 = arith.addf %160, %161 : vector<1x512xf32>
    %163 = arith.mulf %162, %150 : vector<1x512xf32>
    %cst_35 = arith.constant 0.166667521 : f32
    %164 = vector.broadcast %cst_35 : f32 to vector<1x512xf32>
    %165 = arith.addf %163, %164 : vector<1x512xf32>
    %166 = arith.mulf %152, %150 : vector<1x512xf32>
    %167 = arith.mulf %166, %165 : vector<1x512xf32>
    %168 = arith.addf %152, %167 : vector<1x512xf32>
    %cst_36 = arith.constant 1.57079637 : f32
    %169 = vector.broadcast %cst_36 : f32 to vector<1x512xf32>
    %170 = arith.subf %169, %168 : vector<1x512xf32>
    %cst_37 = arith.constant 2.000000e+00 : f32
    %171 = vector.broadcast %cst_37 : f32 to vector<1x512xf32>
    %172 = arith.mulf %171, %168 : vector<1x512xf32>
    %cst_38 = arith.constant 0.000000e+00 : f32
    %173 = vector.broadcast %cst_38 : f32 to vector<1x512xf32>
    %174 = arith.cmpf ogt, %141, %173 : vector<1x512xf32>
    %cst_39 = arith.constant 3.14159274 : f32
    %175 = vector.broadcast %cst_39 : f32 to vector<1x512xf32>
    %176 = arith.subf %175, %172 : vector<1x512xf32>
    %177 = arith.select %174, %172, %176 : vector<1x512xi1>, vector<1x512xf32>
    %178 = arith.select %144, %170, %177 : vector<1x512xi1>, vector<1x512xf32>
    %cst_40 = arith.constant 5.000000e-01 : f32
    %179 = vector.broadcast %cst_40 : f32 to vector<1x512xf32>
    %180 = arith.mulf %178, %179 : vector<1x512xf32>
    %181 = arith.mulf %66, %69 : vector<1x512xf32>
    %182 = arith.mulf %67, %70 : vector<1x512xf32>
    %183 = arith.addf %181, %182 : vector<1x512xf32>
    %184 = arith.mulf %68, %71 : vector<1x512xf32>
    %185 = arith.addf %183, %184 : vector<1x512xf32>
    %186 = arith.mulf %27, %37 : vector<1x512xf32>
    %187 = arith.mulf %28, %39 : vector<1x512xf32>
    %188 = arith.addf %186, %187 : vector<1x512xf32>
    %189 = arith.mulf %29, %41 : vector<1x512xf32>
    %190 = arith.addf %188, %189 : vector<1x512xf32>
    %cst_41 = arith.constant 0.000000e+00 : f32
    %191 = vector.broadcast %cst_41 : f32 to vector<1x512xf32>
    %192 = arith.cmpf ogt, %185, %191 : vector<1x512xf32>
    %cst_42 = arith.constant 0.000000e+00 : f32
    %193 = vector.broadcast %cst_42 : f32 to vector<1x512xf32>
    %194 = arith.cmpf ogt, %190, %193 : vector<1x512xf32>
    %195 = arith.andi %192, %194 : vector<1x512xi1>
    %cst_43 = arith.constant 0.000000e+00 : f32
    %196 = vector.broadcast %cst_43 : f32 to vector<1x512xf32>
    %197 = arith.select %195, %185, %196 : vector<1x512xi1>, vector<1x512xf32>
    %cst_44 = arith.constant 9.99999996E-13 : f32
    %198 = vector.broadcast %cst_44 : f32 to vector<1x512xf32>
    %199 = arith.maximumf %51, %198 : vector<1x512xf32>
    %200 = tpu.reciprocal %199 {approx = true} : vector<1x512xf32> -> vector<1x512xf32>
    %201 = arith.mulf %197, %200 : vector<1x512xf32>
    %cst_45 = arith.constant 9.65659236 : f32
    %202 = vector.broadcast %cst_45 : f32 to vector<1x512xf32>
    %203 = arith.mulf %137, %202 : vector<1x512xf32>
    %204 = tpu.iota {dimensions = array<i32: 0>} : vector<16x1xi32>
    %205 = arith.sitofp %204 : vector<16x1xi32> to vector<16x1xf32>
    %206 = vector.broadcast %205 : vector<16x1xf32> to vector<16x512xf32>
    %207 = vector.broadcast %203 : vector<1x512xf32> to vector<16x512xf32>
    %208 = arith.subf %206, %207 : vector<16x512xf32>
    %209 = math.absf %208 : vector<16x512xf32>
    %cst_46 = arith.constant 1.000000e+00 : f32
    %210 = vector.broadcast %cst_46 : f32 to vector<16x512xf32>
    %211 = arith.subf %210, %209 : vector<16x512xf32>
    %cst_47 = arith.constant 0.000000e+00 : f32
    %212 = vector.broadcast %cst_47 : f32 to vector<16x512xf32>
    %213 = arith.maximumf %212, %211 : vector<16x512xf32>
    %214 = vector.extract_strided_slice %5 {offsets = [0, 0], sizes = [1, 512], strides = [1, 1]} : vector<4x512xf32> to vector<1x512xf32>
    %215 = vector.broadcast %214 : vector<1x512xf32> to vector<16x512xf32>
    %216 = arith.mulf %215, %213 : vector<16x512xf32>
    %217 = vector.extract_strided_slice %5 {offsets = [1, 0], sizes = [1, 512], strides = [1, 1]} : vector<4x512xf32> to vector<1x512xf32>
    %218 = vector.broadcast %217 : vector<1x512xf32> to vector<16x512xf32>
    %219 = arith.mulf %218, %213 : vector<16x512xf32>
    %220 = vector.extract_strided_slice %5 {offsets = [2, 0], sizes = [1, 512], strides = [1, 1]} : vector<4x512xf32> to vector<1x512xf32>
    %221 = vector.broadcast %220 : vector<1x512xf32> to vector<16x512xf32>
    %222 = arith.mulf %221, %213 : vector<16x512xf32>
    %223 = vector.extract_strided_slice %5 {offsets = [3, 0], sizes = [1, 512], strides = [1, 1]} : vector<4x512xf32> to vector<1x512xf32>
    %224 = vector.broadcast %223 : vector<1x512xf32> to vector<16x512xf32>
    %225 = arith.mulf %224, %213 : vector<16x512xf32>
    %226 = tpu.concatenate %216, %219, %222, %225 in 0 : vector<16x512xf32>, vector<16x512xf32>, vector<16x512xf32>, vector<16x512xf32> -> vector<64x512xf32>
    %227 = arith.truncf %226 : vector<64x512xf32> to vector<64x512xbf16>
    %c0_48 = arith.constant 0 : index
    %c0_49 = arith.constant 0 : index
    %c0_50 = arith.constant 0 : index
    %228 = vector.load %arg5[%c0_48, %c0_49, %c0_50] : memref<1x48x64xbf16, #tpu.memory_space<vmem>>, vector<1x48x64xbf16>
    %229 = vector.shape_cast %228 : vector<1x48x64xbf16> to vector<48x64xbf16>
    %cst_51 = arith.constant dense<0.000000e+00> : vector<48x512xf32>
    %230 = tpu.matmul %229, %227, %cst_51 {dimension_numbers = #tpu.dot_dimension_numbers<[1], [0], [0], [1], [0, 0, 1, 1], [], []>} : vector<48x64xbf16>, vector<64x512xbf16>, vector<48x512xf32> -> vector<48x512xf32>
    %cst_52 = arith.constant 9.65659236 : f32
    %231 = vector.broadcast %cst_52 : f32 to vector<1x512xf32>
    %232 = arith.mulf %180, %231 : vector<1x512xf32>
    %233 = tpu.iota {dimensions = array<i32: 0>} : vector<16x1xi32>
    %234 = arith.sitofp %233 : vector<16x1xi32> to vector<16x1xf32>
    %235 = vector.broadcast %234 : vector<16x1xf32> to vector<16x512xf32>
    %236 = vector.broadcast %232 : vector<1x512xf32> to vector<16x512xf32>
    %237 = arith.subf %235, %236 : vector<16x512xf32>
    %238 = math.absf %237 : vector<16x512xf32>
    %cst_53 = arith.constant 1.000000e+00 : f32
    %239 = vector.broadcast %cst_53 : f32 to vector<16x512xf32>
    %240 = arith.subf %239, %238 : vector<16x512xf32>
    %cst_54 = arith.constant 0.000000e+00 : f32
    %241 = vector.broadcast %cst_54 : f32 to vector<16x512xf32>
    %242 = arith.maximumf %241, %240 : vector<16x512xf32>
    %243 = vector.extract_strided_slice %230 {offsets = [0, 0], sizes = [16, 512], strides = [1, 1]} : vector<48x512xf32> to vector<16x512xf32>
    %244 = arith.mulf %243, %242 : vector<16x512xf32>
    %cst_55 = arith.constant dense<0.000000e+00> : vector<512xf32>
    %245 = vector.multi_reduction <add>, %244, %cst_55 [0] : vector<16x512xf32> to vector<512xf32>
    %246 = vector.shape_cast %245 : vector<512xf32> to vector<1x512xf32>
    %247 = vector.broadcast %13 : f32 to vector<1x512xf32>
    %248 = arith.mulf %201, %247 : vector<1x512xf32>
    %249 = arith.mulf %246, %248 : vector<1x512xf32>
    %250 = vector.extract_strided_slice %230 {offsets = [16, 0], sizes = [16, 512], strides = [1, 1]} : vector<48x512xf32> to vector<16x512xf32>
    %251 = arith.mulf %250, %242 : vector<16x512xf32>
    %cst_56 = arith.constant dense<0.000000e+00> : vector<512xf32>
    %252 = vector.multi_reduction <add>, %251, %cst_56 [0] : vector<16x512xf32> to vector<512xf32>
    %253 = vector.shape_cast %252 : vector<512xf32> to vector<1x512xf32>
    %254 = vector.broadcast %15 : f32 to vector<1x512xf32>
    %255 = arith.mulf %201, %254 : vector<1x512xf32>
    %256 = arith.mulf %253, %255 : vector<1x512xf32>
    %257 = vector.extract_strided_slice %230 {offsets = [32, 0], sizes = [16, 512], strides = [1, 1]} : vector<48x512xf32> to vector<16x512xf32>
    %258 = arith.mulf %257, %242 : vector<16x512xf32>
    %cst_57 = arith.constant dense<0.000000e+00> : vector<512xf32>
    %259 = vector.multi_reduction <add>, %258, %cst_57 [0] : vector<16x512xf32> to vector<512xf32>
    %260 = vector.shape_cast %259 : vector<512xf32> to vector<1x512xf32>
    %261 = vector.broadcast %17 : f32 to vector<1x512xf32>
    %262 = arith.mulf %201, %261 : vector<1x512xf32>
    %263 = arith.mulf %260, %262 : vector<1x512xf32>
    %264 = tpu.concatenate %249, %256, %263 in 0 : vector<1x512xf32>, vector<1x512xf32>, vector<1x512xf32> -> vector<3x512xf32>
    %c0_58 = arith.constant 0 : index
    %c0_59 = arith.constant 0 : index
    %c0_60 = arith.constant 0 : index
    %265 = vector.load %arg7[%c0_58, %c0_59, %c0_60] : memref<1x3x512xf32, #tpu.memory_space<vmem>>, vector<1x3x512xf32>
    %266 = vector.shape_cast %265 : vector<1x3x512xf32> to vector<3x512xf32>
    %267 = vector.shape_cast %264 : vector<3x512xf32> to vector<1x3x512xf32>
    tpu.vector_store %arg7[%c0_58, %c0_59, %c0_60], %267 {strides = array<i32>} : memref<1x3x512xf32, #tpu.memory_space<vmem>>, vector<1x3x512xf32>,
    return
  }
  func.func @transform_0(%arg0: i32, %arg1: i32) -> (i32, i32) {
    %c0_i32 = arith.constant 0 : i32
    %c0_i32_0 = arith.constant 0 : i32
    %c0_i32_1 = arith.constant 0 : i32
    return %c0_i32, %c0_i32_0 : i32, i32
  }
  func.func @transform_1(%arg0: i32, %arg1: i32) -> (i32, i32, i32) {
    %c0_i32 = arith.constant 0 : i32
    %c0_i32_0 = arith.constant 0 : i32
    return %arg0, %c0_i32, %arg1 : i32, i32, i32
  }
  func.func @transform_2(%arg0: i32, %arg1: i32) -> (i32, i32, i32) {
    %c0_i32 = arith.constant 0 : i32
    %c0_i32_0 = arith.constant 0 : i32
    return %arg0, %c0_i32, %arg1 : i32, i32, i32
  }
  func.func @transform_3(%arg0: i32, %arg1: i32) -> (i32, i32, i32) {
    %c0_i32 = arith.constant 0 : i32
    %c0_i32_0 = arith.constant 0 : i32
    %c0_i32_1 = arith.constant 0 : i32
    return %arg0, %c0_i32, %c0_i32_0 : i32, i32, i32
  }
  func.func @transform_4(%arg0: i32, %arg1: i32) -> (i32, i32, i32) {
    %c0_i32 = arith.constant 0 : i32
    %c0_i32_0 = arith.constant 0 : i32
    return %arg0, %c0_i32, %arg1 : i32, i32, i32
  }
  func.func @transform_5(%arg0: i32, %arg1: i32) -> (i32, i32, i32) {
    %c0_i32 = arith.constant 0 : i32
    %c0_i32_0 = arith.constant 0 : i32
    return %arg0, %c0_i32, %arg1 : i32, i32, i32
  }
}

</mosaic_0001>

<llo_original>
// kernel: tpu_custom_call.1
$region0: #{tpu_custom_call.1}
  #allocation0 [shape = 'u32[]', space=smem, size = 0x4, offset = 0x4, fixed_abs, tag = 'smem constant byte address 0x4 - core index']
  #allocation1 [shape = 'u32[72,128]{1,0:T(1,128)}', space=vmem, size = 0x9000, scoped, tag = 'internal scratch']
  %s0 = inlined_call_operand.vmem [shape: f32[2,9], index: 0, kind: input, shape index: {}]
  %s1 = inlined_call_operand.vmem [shape: f32[2,3,512], index: 1, kind: input, shape index: {}]
  %s2 = inlined_call_operand.vmem [shape: f32[2,3,512], index: 2, kind: input, shape index: {}]
  %s3 = inlined_call_operand.vmem [shape: bf16[2,48,64], index: 3, kind: input, shape index: {}]
  %s4 = inlined_call_operand.vmem [shape: f32[2,4,512], index: 4, kind: input, shape index: {}]
  %s5 = inlined_call_operand.vmem [shape: f32[2,3,512], index: 5, kind: output, shape index: {}]
  %s6 = sld [smem:[#allocation0]]
  $region57: #{tpu_custom_call.1} parent=0
    _
  %s8 = ssub.s32 1, %s6
  %s9 = scalar_select 0, %s8, %s6
  $region1: #{tpu_custom_call.1} parent=0
    #allocation2 [shape = 'u8[1024]{0}', space=smem, size = 0x400, scoped, tag = 'input window, operand 0, single buffered']
    #allocation3 [shape = 's32[2]{0}', space=sflag, size = 0x8, scoped, tag = 'scoped memory for tpu_custom_call.1']
    %10 = vsyncpa [#allocation3], 0
    loop: start=0, step=1, limit=4
    $region2: #{tpu_custom_call.1} parent=1 // loop_pre_header
      _
    $region3: #{tpu_custom_call.1} parent=1 // loop_header
      %s12 = sphi 0, %s16
      %p13 = scmp.ge.s32.totalorder %s12, 4
      %s19 = sphi 0, %s31
      %s20 = sphi 0, %s27
      %s21 = sphi 0, %s19
      %s22 = sphi 0, %s20
      %s23 = sphi 0, %s21
      %s24 = sphi 0, %s22
      %s32 = sphi 0, %s32
      %s34 = sphi 0, %s32
      %s35 = sphi 0, %s34
      %s49 = sphi 0, %s35
      %s57 = sphi 0, %s59
      %s60 = sphi 0, %s57
      %s61 = sphi 0, %s60
      %s77 = sphi 0, %s61
      %s85 = sphi 0, %s87
      %s88 = sphi 0, %s85
      %s89 = sphi 0, %s88
      %s105 = sphi 0, %s89
      %s111 = sphi 0, %s113
      %s114 = sphi 0, %s111
      %s115 = sphi 0, %s114
      %s131 = sphi 0, %s115
      %s139 = sphi 0, %s141
      %s142 = sphi 0, %s139
      %s143 = sphi 0, %s142
      %s159 = sphi 0, %s143
      %s167 = sphi 0, %s169
      %s170 = sphi 0, %s167
      %s171 = sphi 0, %s170
      %s187 = sphi 0, %s171
    $region4: #{tpu_custom_call.1} parent=1 // loop_header_branch
      %15 = sbr.rel (%p13) target = $region8
    $region5: #{tpu_custom_call.1} parent=1 // loop_body
      %s17 = ssub.s32 %s12, 1
      %s18 = ssub.s32 %s12, 2
      %s25 = sadd.s32 1, %s20
      %p26 = scmp.ge.s32.totalorder %s25, 1
      %s27 = scalar_select %p26, 0, %s25
      %s28 = sadd.s32 1, %s19
      %s29 = scalar_select %p26, %s28, %s19
      %p30 = scmp.ge.s32.totalorder %s29, 2
      %s31 = scalar_select %p30, 0, %s29
      %s33 = sadd.s32 %s32, 1
      %p36 = scmp.eq.s32.totalorder %s12, 1
      %p37 = scmp.ne.s32.totalorder %s32, %s34
      %p38 = scmp.eq.s32.totalorder %s12, 0
      %p39 = por %p37, %p38
      %p40 = scmp.ne.s32.totalorder %s32, %s34
      %p41 = scmp.eq.s32.totalorder %s17, 1
      %p42 = por %p40, %p41
      %p43 = scmp.ne.s32.totalorder %s34, %s35
      %p44 = scmp.eq.s32.totalorder %s17, 0
      %p45 = por %p43, %p44
      %p46 = scmp.ne.s32.totalorder %s34, %s35
      %p47 = scmp.eq.s32.totalorder %s18, 1
      %p48 = por %p46, %p47
      %p50 = scmp.ne.s32.totalorder %s35, %s49
      %p51 = scmp.eq.s32.totalorder %s18, 0
      %p52 = por %p50, %p51
      %s53 = ssub.s32 %s19, %s31
      %s54 = ssub.s32 %s20, %s27
      %s55 = sor.u32 %s53, %s54
      %p56 = scmp.eq.s32.totalorder %s55, 0
      %s58 = sadd.s32 %s57, 1
      %s59 = scalar_select %p56, %s57, %s58
      %p62 = pneg %p56
      %p63 = scmp.eq.s32.totalorder %s12, 1
      %p64 = por %p62, %p63
      %p65 = scmp.ne.s32.totalorder %s57, %s60
      %p66 = scmp.eq.s32.totalorder %s12, 0
      %p67 = por %p65, %p66
      %p68 = scmp.ne.s32.totalorder %s57, %s60
      %p69 = scmp.eq.s32.totalorder %s17, 1
      %p70 = por %p68, %p69
      %p71 = scmp.ne.s32.totalorder %s60, %s61
      %p72 = scmp.eq.s32.totalorder %s17, 0
      %p73 = por %p71, %p72
      %p74 = scmp.ne.s32.totalorder %s60, %s61
      %p75 = scmp.eq.s32.totalorder %s18, 1
      %p76 = por %p74, %p75
      %p78 = scmp.ne.s32.totalorder %s61, %s77
      %p79 = scmp.eq.s32.totalorder %s18, 0
      %p80 = por %p78, %p79
      %s81 = ssub.s32 %s19, %s31
      %s82 = ssub.s32 %s20, %s27
      %s83 = sor.u32 %s81, %s82
      %p84 = scmp.eq.s32.totalorder %s83, 0
      %s86 = sadd.s32 %s85, 1
      %s87 = scalar_select %p84, %s85, %s86
      %p90 = pneg %p84
      %p91 = scmp.eq.s32.totalorder %s12, 1
      %p92 = por %p90, %p91
      %p93 = scmp.ne.s32.totalorder %s85, %s88
      %p94 = scmp.eq.s32.totalorder %s12, 0
      %p95 = por %p93, %p94
      %p96 = scmp.ne.s32.totalorder %s85, %s88
      %p97 = scmp.eq.s32.totalorder %s17, 1
      %p98 = por %p96, %p97
      %p99 = scmp.ne.s32.totalorder %s88, %s89
      %p100 = scmp.eq.s32.totalorder %s17, 0
      %p101 = por %p99, %p100
      %p102 = scmp.ne.s32.totalorder %s88, %s89
      %p103 = scmp.eq.s32.totalorder %s18, 1
      %p104 = por %p102, %p103
      %p106 = scmp.ne.s32.totalorder %s89, %s105
      %p107 = scmp.eq.s32.totalorder %s18, 0
      %p108 = por %p106, %p107
      %s109 = ssub.s32 %s19, %s31
      %p110 = scmp.eq.s32.totalorder %s109, 0
      %s112 = sadd.s32 %s111, 1
      %s113 = scalar_select %p110, %s111, %s112
      %p116 = pneg %p110
      %p117 = scmp.eq.s32.totalorder %s12, 1
      %p118 = por %p116, %p117
      %p119 = scmp.ne.s32.totalorder %s111, %s114
      %p120 = scmp.eq.s32.totalorder %s12, 0
      %p121 = por %p119, %p120
      %p122 = scmp.ne.s32.totalorder %s111, %s114
      %p123 = scmp.eq.s32.totalorder %s17, 1
      %p124 = por %p122, %p123
      %p125 = scmp.ne.s32.totalorder %s114, %s115
      %p126 = scmp.eq.s32.totalorder %s17, 0
      %p127 = por %p125, %p126
      %p128 = scmp.ne.s32.totalorder %s114, %s115
      %p129 = scmp.eq.s32.totalorder %s18, 1
      %p130 = por %p128, %p129
      %p132 = scmp.ne.s32.totalorder %s115, %s131
      %p133 = scmp.eq.s32.totalorder %s18, 0
      %p134 = por %p132, %p133
      %s135 = ssub.s32 %s19, %s31
      %s136 = ssub.s32 %s20, %s27
      %s137 = sor.u32 %s135, %s136
      %p138 = scmp.eq.s32.totalorder %s137, 0
      %s140 = sadd.s32 %s139, 1
      %s141 = scalar_select %p138, %s139, %s140
      %p144 = pneg %p138
      %p145 = scmp.eq.s32.totalorder %s12, 1
      %p146 = por %p144, %p145
      %p147 = scmp.ne.s32.totalorder %s139, %s142
      %p148 = scmp.eq.s32.totalorder %s12, 0
      %p149 = por %p147, %p148
      %p150 = scmp.ne.s32.totalorder %s139, %s142
      %p151 = scmp.eq.s32.totalorder %s17, 1
      %p152 = por %p150, %p151
      %p153 = scmp.ne.s32.totalorder %s142, %s143
      %p154 = scmp.eq.s32.totalorder %s17, 0
      %p155 = por %p153, %p154
      %p156 = scmp.ne.s32.totalorder %s142, %s143
      %p157 = scmp.eq.s32.totalorder %s18, 1
      %p158 = por %p156, %p157
      %p160 = scmp.ne.s32.totalorder %s143, %s159
      %p161 = scmp.eq.s32.totalorder %s18, 0
      %p162 = por %p160, %p161
      %s163 = ssub.s32 %s19, %s31
      %s164 = ssub.s32 %s20, %s27
      %s165 = sor.u32 %s163, %s164
      %p166 = scmp.eq.s32.totalorder %s165, 0
      %s168 = sadd.s32 %s167, 1
      %s169 = scalar_select %p166, %s167, %s168
      %p172 = pneg %p166
      %p173 = scmp.eq.s32.totalorder %s12, 1
      %p174 = por %p172, %p173
      %p175 = scmp.ne.s32.totalorder %s167, %s170
      %p176 = scmp.eq.s32.totalorder %s12, 0
      %p177 = por %p175, %p176
      %p178 = scmp.ne.s32.totalorder %s167, %s170
      %p179 = scmp.eq.s32.totalorder %s17, 1
      %p180 = por %p178, %p179
      %p181 = scmp.ne.s32.totalorder %s170, %s171
      %p182 = scmp.eq.s32.totalorder %s17, 0
      %p183 = por %p181, %p182
      %p184 = scmp.ne.s32.totalorder %s170, %s171
      %p185 = scmp.eq.s32.totalorder %s18, 1
      %p186 = por %p184, %p185
      %p188 = scmp.ne.s32.totalorder %s171, %s187
      %p189 = scmp.eq.s32.totalorder %s18, 0
      %p190 = por %p188, %p189
      %p191 = scmp.le.s32.totalorder 1, %s12
      %p192 = scmp.lt.s32.totalorder %s12, 3
      %p193 = pnand %p191, %p192
      %p194 = pneg %p193
      // Predicated region
      $region9: #{tpu_custom_call.1} parent=5 // pred_check
        _
      $region10: #{tpu_custom_call.1} parent=5 // pred_check_branch
        %196 = sbr.rel (%p193) target = $region12
      $region11: #{tpu_custom_call.1} parent=5 // pred_region
        %s197 = ssub.s32 %s12, 1
        // Predicated region
        $region13: #{tpu_custom_call.1} parent=11 // pred_check
          %p198 = pneg %p45
        $region14: #{tpu_custom_call.1} parent=11 // pred_check_branch
          %200 = sbr.rel (%p198) target = $region16
        $region15: #{tpu_custom_call.1} parent=11 // pred_region
          %202 = vsyncadd [#allocation3], 0
          %s204 = sshll.u32 %s0, 4
          %s205 = int_to_ptr.vmem [resolvable:$true] %s204
          %207 = dma.vmem_to_smem %s205, 32, [#allocation2], [#allocation3]
        $region16: #{tpu_custom_call.1} parent=11 // pred_fallthru
          _
      $region12: #{tpu_custom_call.1} parent=5 // pred_fallthru
        _
      %p208 = scmp.lt.s32.totalorder %s12, 2
      // Predicated region
      $region17: #{tpu_custom_call.1} parent=5 // pred_check
        %p209 = pneg %p208
      $region18: #{tpu_custom_call.1} parent=5 // pred_check_branch
        %211 = sbr.rel (%p209) target = $region20
      $region19: #{tpu_custom_call.1} parent=5 // pred_region
        // Predicated region
        $region21: #{tpu_custom_call.1} parent=19 // pred_check
          %p212 = pneg %p67
        $region22: #{tpu_custom_call.1} parent=19 // pred_check_branch
          %214 = sbr.rel (%p212) target = $region24
        $region23: #{tpu_custom_call.1} parent=19 // pred_region
          %s215 = smul.u32 4, %s20
          %p216 = scmp.lt.s32.totalorder %s19, 1
          %s217 = scalar_select %p216, %s19, 1
          %p218 = scmp.lt.s32.totalorder %s215, 3
          %s219 = scalar_select %p218, %s215, 3
          %s220 = smul.addr %s217, 4
          %s221 = sadd.s32 %s219, %s220
          %s222 = smul.addr %s221, 4
          %s223 = scalar_lea.vmem %s1, %s222
          %s224 = smul.u32 4, %s20
        $region24: #{tpu_custom_call.1} parent=19 // pred_fallthru
          _
        // Predicated region
        $region25: #{tpu_custom_call.1} parent=19 // pred_check
          %p225 = pneg %p95
        $region26: #{tpu_custom_call.1} parent=19 // pred_check_branch
          %227 = sbr.rel (%p225) target = $region28
        $region27: #{tpu_custom_call.1} parent=19 // pred_region
          %s228 = smul.u32 4, %s20
          %p229 = scmp.lt.s32.totalorder %s19, 1
          %s230 = scalar_select %p229, %s19, 1
          %p231 = scmp.lt.s32.totalorder %s228, 3
          %s232 = scalar_select %p231, %s228, 3
          %s233 = smul.addr %s230, 4
          %s234 = sadd.s32 %s232, %s233
          %s235 = smul.addr %s234, 4
          %s236 = scalar_lea.vmem %s2, %s235
          %s237 = smul.u32 4, %s20
        $region28: #{tpu_custom_call.1} parent=19 // pred_fallthru
          _
        // Predicated region
        $region29: #{tpu_custom_call.1} parent=19 // pred_check
          %p238 = pneg %p121
        $region30: #{tpu_custom_call.1} parent=19 // pred_check_branch
          %240 = sbr.rel (%p238) target = $region32
        $region31: #{tpu_custom_call.1} parent=19 // pred_region
          %p241 = scmp.lt.s32.totalorder %s19, 1
          %s242 = scalar_select %p241, %s19, 1
          %s243 = smul.addr %s242, 6
          %s244 = smul.addr %s243, 4
          %s245 = scalar_lea.vmem %s3, %s244
        $region32: #{tpu_custom_call.1} parent=19 // pred_fallthru
          _
        // Predicated region
        $region33: #{tpu_custom_call.1} parent=19 // pred_check
          %p246 = pneg %p149
        $region34: #{tpu_custom_call.1} parent=19 // pred_check_branch
          %248 = sbr.rel (%p246) target = $region36
        $region35: #{tpu_custom_call.1} parent=19 // pred_region
          %s249 = smul.u32 4, %s20
          %p250 = scmp.lt.s32.totalorder %s19, 1
          %s251 = scalar_select %p250, %s19, 1
          %p252 = scmp.lt.s32.totalorder %s249, 3
          %s253 = scalar_select %p252, %s249, 3
          %s254 = smul.addr %s251, 4
          %s255 = sadd.s32 %s253, %s254
          %s256 = smul.addr %s255, 4
          %s257 = scalar_lea.vmem %s4, %s256
          %s258 = smul.u32 4, %s20
        $region36: #{tpu_custom_call.1} parent=19 // pred_fallthru
          _
      $region20: #{tpu_custom_call.1} parent=5 // pred_fallthru
        _
      %p259 = scmp.le.s32.totalorder 1, %s12
      %p260 = scmp.lt.s32.totalorder %s12, 3
      %p261 = pnand %p259, %p260
      %p262 = pneg %p261
      // Predicated region
      $region37: #{tpu_custom_call.1} parent=5 // pred_check
        _
      $region38: #{tpu_custom_call.1} parent=5 // pred_check_branch
        %264 = sbr.rel (%p261) target = $region40
      $region39: #{tpu_custom_call.1} parent=5 // pred_region
        %s265 = ssub.s32 %s12, 1
        // Predicated region
        $region41: #{tpu_custom_call.1} parent=39 // pred_check
          %p266 = pneg %p45
        $region42: #{tpu_custom_call.1} parent=39 // pred_check_branch
          %268 = sbr.rel (%p266) target = $region44
        $region43: #{tpu_custom_call.1} parent=39 // pred_region
          %270 = dma.done [#allocation3], 32
        $region44: #{tpu_custom_call.1} parent=39 // pred_fallthru
          _
        %271 = sfence
        %p272 = pneg %p45
        %p273 = pneg %p42
        %s274 = smul.u32 4, %s22
        %p275 = scmp.lt.s32.totalorder %s21, 1
        %s276 = scalar_select %p275, %s21, 1
        %p277 = scmp.lt.s32.totalorder %s274, 3
        %s278 = scalar_select %p277, %s274, 3
        %s279 = smul.addr %s276, 4
        %s280 = sadd.s32 %s278, %s279
        %s281 = smul.addr %s280, 4
        %s282 = scalar_lea.vmem %s1, %s281
        %p283 = pneg %p73
        %p284 = pneg %p70
        %s285 = smul.u32 4, %s22
        %p286 = scmp.lt.s32.totalorder %s21, 1
        %s287 = scalar_select %p286, %s21, 1
        %p288 = scmp.lt.s32.totalorder %s285, 3
        %s289 = scalar_select %p288, %s285, 3
        %s290 = smul.addr %s287, 4
        %s291 = sadd.s32 %s289, %s290
        %s292 = smul.addr %s291, 4
        %s293 = scalar_lea.vmem %s2, %s292
        %p294 = pneg %p101
        %p295 = pneg %p98
        %p296 = scmp.lt.s32.totalorder %s21, 1
        %s297 = scalar_select %p296, %s21, 1
        %s298 = smul.addr %s297, 6
        %s299 = smul.addr %s298, 4
        %s300 = scalar_lea.vmem %s3, %s299
        %p301 = pneg %p127
        %p302 = pneg %p124
        %s303 = smul.u32 4, %s22
        %p304 = scmp.lt.s32.totalorder %s21, 1
        %s305 = scalar_select %p304, %s21, 1
        %p306 = scmp.lt.s32.totalorder %s303, 3
        %s307 = scalar_select %p306, %s303, 3
        %s308 = smul.addr %s305, 4
        %s309 = sadd.s32 %s307, %s308
        %s310 = smul.addr %s309, 4
        %s311 = scalar_lea.vmem %s4, %s310
        %p312 = pneg %p155
        %p313 = pneg %p152
        %p314 = pneg %p183
        %p315 = pneg %p180
        %s316 = smul.u32 4, %s22
        %p317 = scmp.lt.s32.totalorder %s21, 1
        %s318 = scalar_select %p317, %s21, 1
        %p319 = scmp.lt.s32.totalorder %s316, 3
        %s320 = scalar_select %p319, %s316, 3
        %s321 = smul.addr %s318, 4
        %s322 = sadd.s32 %s320, %s321
        %s323 = smul.addr %s322, 4
        %s324 = scalar_lea.vmem %s5, %s323
        %s325 = smul.u32 4, %s22
        %p326 = scmp.lt.s32.totalorder %s21, 1
        %s327 = scalar_select %p326, %s21, 1
        %p328 = scmp.lt.s32.totalorder %s325, 3
        %s329 = scalar_select %p328, %s325, 3
        %s330 = smul.addr %s327, 4
        %s331 = sadd.s32 %s329, %s330
        %s332 = smul.addr %s331, 4
        %s333 = scalar_lea.vmem %s1, %s332
        %s334 = smul.u32 4, %s22
        %s335 = smul.u32 4, %s22
        %p336 = scmp.lt.s32.totalorder %s21, 1
        %s337 = scalar_select %p336, %s21, 1
        %p338 = scmp.lt.s32.totalorder %s335, 3
        %s339 = scalar_select %p338, %s335, 3
        %s340 = smul.addr %s337, 4
        %s341 = sadd.s32 %s339, %s340
        %s342 = smul.addr %s341, 4
        %s343 = scalar_lea.vmem %s2, %s342
        %s344 = smul.u32 4, %s22
        %p345 = scmp.lt.s32.totalorder %s21, 1
        %s346 = scalar_select %p345, %s21, 1
        %s347 = smul.addr %s346, 6
        %s348 = smul.addr %s347, 4
        %s349 = scalar_lea.vmem %s3, %s348
        %s350 = smul.u32 4, %s22
        %p351 = scmp.lt.s32.totalorder %s21, 1
        %s352 = scalar_select %p351, %s21, 1
        %p353 = scmp.lt.s32.totalorder %s350, 3
        %s354 = scalar_select %p353, %s350, 3
        %s355 = smul.addr %s352, 4
        %s356 = sadd.s32 %s354, %s355
        %s357 = smul.addr %s356, 4
        %s358 = scalar_lea.vmem %s4, %s357
        %s359 = smul.u32 4, %s22
        %s360 = smul.u32 4, %s22
        %p361 = scmp.lt.s32.totalorder %s21, 1
        %s362 = scalar_select %p361, %s21, 1
        %p363 = scmp.lt.s32.totalorder %s360, 3
        %s364 = scalar_select %p363, %s360, 3
        %s365 = smul.addr %s362, 4
        %s366 = sadd.s32 %s364, %s365
        %s367 = smul.addr %s366, 4
        %s368 = scalar_lea.vmem %s5, %s367
        %s369 = smul.u32 4, %s22
        %v371 = vld [vmem:[%s333] sm:$0x77]
        %v372 = vld [vmem:[%s333 + $0x8] sm:$0x77]
        %v373 = vld [vmem:[%s343] sm:$0x77]
        %v374 = vld [vmem:[%s343 + $0x8] sm:$0x77]
        %v375 = vld [vmem:[%s358] sm:$0xff]
        %v376 = vld [vmem:[%s358 + $0x8] sm:$0xff]
        %s377 = smul.u32 %s21, 128
        %s378 = sld [smem:[#allocation2 + %s377]]
        %s379 = sadd.s32 %s377, 1
        %s380 = sld [smem:[#allocation2 + %s379]]
        %s381 = sadd.s32 %s377, 2
        %s382 = sld [smem:[#allocation2 + %s381]]
        %s383 = sadd.s32 %s377, 3
        %s384 = sld [smem:[#allocation2 + %s383]]
        %s385 = sadd.s32 %s377, 4
        %s386 = sld [smem:[#allocation2 + %s385]]
        %s387 = sadd.s32 %s377, 5
        %s388 = sld [smem:[#allocation2 + %s387]]
        %s389 = sadd.s32 %s377, 6
        %s390 = sld [smem:[#allocation2 + %s389]]
        %s391 = sadd.s32 %s377, 7
        %s392 = sld [smem:[#allocation2 + %s391]]
        %s393 = sadd.s32 %s377, 8
        %s394 = sld [smem:[#allocation2 + %s393]]
        %v395 = vstv %s378
        %v396 = vsub.f32 %v395, %v371
        %v397 = vsub.f32 %v395, %v372
        %v398 = vstv %s380
        %v399 = vsub.f32 %v398, %v371
        %v400 = vsub.f32 %v398, %v372
        %v401 = vstv %s382
        %v402 = vsub.f32 %v401, %v371
        %v403 = vsub.f32 %v401, %v372
        %v404 = vstv %s390
        %v405 = vsub.f32 %v404, %v371
        %v406 = vsub.f32 %v404, %v372
        %v407 = vstv %s392
        %v408 = vsub.f32 %v407, %v371
        %v409 = vsub.f32 %v407, %v372
        %v410 = vstv %s394
        %v411 = vsub.f32 %v410, %v371
        %v412 = vsub.f32 %v410, %v372
        %v413 = vmul.f32 %v373, %v373
        %v414 = vmul.f32 %v374, %v374
        %v417 = vrot.slane %v413, 5
        %v418 = vrot.slane %v417, 4
        %v419 = vrot.slane %v414, 5
        %v420 = vrot.slane %v419, 4
        %v423 = vadd.f32 %v413, %v418
        %v424 = vadd.f32 %v414, %v420
        %v425 = vrot.slane %v413, 6
        %v426 = vrot.slane %v425, 4
        %v427 = vrot.slane %v414, 6
        %v428 = vrot.slane %v427, 4
        %v431 = vadd.f32 %v423, %v426
        %v432 = vadd.f32 %v424, %v428
        %v433 = vmul.f32 %v396, %v396
        %v434 = vmul.f32 %v397, %v397
        %v435 = vmul.f32 %v399, %v399
        %v436 = vmul.f32 %v400, %v400
        %v439 = vrot.slane %v435, 5
        %v440 = vrot.slane %v439, 4
        %v441 = vrot.slane %v436, 5
        %v442 = vrot.slane %v441, 4
        %v445 = vadd.f32 %v433, %v440
        %v446 = vadd.f32 %v434, %v442
        %v447 = vmul.f32 %v402, %v402
        %v448 = vmul.f32 %v403, %v403
        %v451 = vrot.slane %v447, 6
        %v452 = vrot.slane %v451, 4
        %v453 = vrot.slane %v448, 6
        %v454 = vrot.slane %v453, 4
        %v457 = vadd.f32 %v445, %v452
        %v458 = vadd.f32 %v446, %v454
        %v459 = vmul.f32 %v405, %v405
        %v460 = vmul.f32 %v406, %v406
        %v461 = vmul.f32 %v408, %v408
        %v462 = vmul.f32 %v409, %v409
        %v465 = vrot.slane %v461, 5
        %v466 = vrot.slane %v465, 4
        %v467 = vrot.slane %v462, 5
        %v468 = vrot.slane %v467, 4
        %v471 = vadd.f32 %v459, %v466
        %v472 = vadd.f32 %v460, %v468
        %v473 = vmul.f32 %v411, %v411
        %v474 = vmul.f32 %v412, %v412
        %v477 = vrot.slane %v473, 6
        %v478 = vrot.slane %v477, 4
        %v479 = vrot.slane %v474, 6
        %v480 = vrot.slane %v479, 4
        %v483 = vadd.f32 %v471, %v478
        %v484 = vadd.f32 %v472, %v480
        %v485 = vmax.f32 %v431, 1e-24
        %v486 = vmax.f32 %v432, 1e-24
        %v487 = vrsqrt.pop %v485
        %v488 = vmul.f32 %v487, %v485
        %v489 = vmul.f32 %v488, %v487
        %v490 = vmul.f32 0.5, %v489
        %v491 = vsub.f32 1.5, %v490
        %v492 = vmul.f32 %v487, %v491
        %vm493 = vweird.f32 %v485
        %vm494 = vweird.f32 %v487
        %vm495 = vmor %vm493, %vm494
        %v496 = vsel %vm495, %v487, %v492
        %v497 = vrsqrt.pop %v486
        %v498 = vmul.f32 %v497, %v486
        %v499 = vmul.f32 %v498, %v497
        %v500 = vmul.f32 0.5, %v499
        %v501 = vsub.f32 1.5, %v500
        %v502 = vmul.f32 %v497, %v501
        %vm503 = vweird.f32 %v486
        %vm504 = vweird.f32 %v497
        %vm505 = vmor %vm503, %vm504
        %v506 = vsel %vm505, %v497, %v502
        %v507 = vmax.f32 %v457, 1e-24
        %v508 = vmax.f32 %v458, 1e-24
        %v509 = vrsqrt.pop %v507
        %v510 = vmul.f32 %v509, %v507
        %v511 = vmul.f32 %v510, %v509
        %v512 = vmul.f32 0.5, %v511
        %v513 = vsub.f32 1.5, %v512
        %v514 = vmul.f32 %v509, %v513
        %vm515 = vweird.f32 %v507
        %vm516 = vweird.f32 %v509
        %vm517 = vmor %vm515, %vm516
        %v518 = vsel %vm517, %v509, %v514
        %v519 = vrsqrt.pop %v508
        %v520 = vmul.f32 %v519, %v508
        %v521 = vmul.f32 %v520, %v519
        %v522 = vmul.f32 0.5, %v521
        %v523 = vsub.f32 1.5, %v522
        %v524 = vmul.f32 %v519, %v523
        %vm525 = vweird.f32 %v508
        %vm526 = vweird.f32 %v519
        %vm527 = vmor %vm525, %vm526
        %v528 = vsel %vm527, %v519, %v524
        %v529 = vmax.f32 %v483, 1e-24
        %v530 = vmax.f32 %v484, 1e-24
        %v531 = vrsqrt.pop %v529
        %v532 = vmul.f32 %v531, %v529
        %v533 = vmul.f32 %v532, %v531
        %v534 = vmul.f32 0.5, %v533
        %v535 = vsub.f32 1.5, %v534
        %v536 = vmul.f32 %v531, %v535
        %vm537 = vweird.f32 %v529
        %vm538 = vweird.f32 %v531
        %vm539 = vmor %vm537, %vm538
        %v540 = vsel %vm539, %v531, %v536
        %v541 = vrsqrt.pop %v530
        %v542 = vmul.f32 %v541, %v530
        %v543 = vmul.f32 %v542, %v541
        %v544 = vmul.f32 0.5, %v543
        %v545 = vsub.f32 1.5, %v544
        %v546 = vmul.f32 %v541, %v545
        %vm547 = vweird.f32 %v530
        %vm548 = vweird.f32 %v541
        %vm549 = vmor %vm547, %vm548
        %v550 = vsel %vm549, %v541, %v546
        %v551 = vmul.f32 %v373, %v496
        %v552 = vmul.f32 %v374, %v506
        %v555 = vrot.slane %v496, 7
        %v556 = vrot.slane %v506, 7
        %v559 = vmul.f32 %v373, %v555
        %v560 = vmul.f32 %v374, %v556
        %v561 = vrot.slane %v496, 6
        %v562 = vrot.slane %v506, 6
        %v565 = vmul.f32 %v373, %v561
        %v566 = vmul.f32 %v374, %v562
        %v567 = vmul.f32 %v396, %v518
        %v568 = vmul.f32 %v397, %v528
        %v571 = vrot.slane %v518, 7
        %v572 = vrot.slane %v528, 7
        %v575 = vmul.f32 %v399, %v571
        %v576 = vmul.f32 %v400, %v572
        %v577 = vrot.slane %v518, 6
        %v578 = vrot.slane %v528, 6
        %v581 = vmul.f32 %v402, %v577
        %v582 = vmul.f32 %v403, %v578
        %v583 = vmul.f32 %v405, %v540
        %v584 = vmul.f32 %v406, %v550
        %v587 = vrot.slane %v540, 7
        %v588 = vrot.slane %v550, 7
        %v591 = vmul.f32 %v408, %v587
        %v592 = vmul.f32 %v409, %v588
        %v593 = vrot.slane %v540, 6
        %v594 = vrot.slane %v550, 6
        %v597 = vmul.f32 %v411, %v593
        %v598 = vmul.f32 %v412, %v594
        %v599 = vadd.f32 %v567, %v583
        %v600 = vadd.f32 %v568, %v584
        %v601 = vadd.f32 %v575, %v591
        %v602 = vadd.f32 %v576, %v592
        %v603 = vadd.f32 %v581, %v597
        %v604 = vadd.f32 %v582, %v598
        %v605 = vmul.f32 %v599, %v599
        %v606 = vmul.f32 %v600, %v600
        %v607 = vmul.f32 %v601, %v601
        %v608 = vmul.f32 %v602, %v602
        %v611 = vrot.slane %v607, 5
        %v612 = vrot.slane %v611, 4
        %v613 = vrot.slane %v608, 5
        %v614 = vrot.slane %v613, 4
        %v617 = vadd.f32 %v605, %v612
        %v618 = vadd.f32 %v606, %v614
        %v619 = vmul.f32 %v603, %v603
        %v620 = vmul.f32 %v604, %v604
        %v623 = vrot.slane %v619, 6
        %v624 = vrot.slane %v623, 4
        %v625 = vrot.slane %v620, 6
        %v626 = vrot.slane %v625, 4
        %v629 = vadd.f32 %v617, %v624
        %v630 = vadd.f32 %v618, %v626
        %v631 = vmax.f32 %v629, 1e-24
        %v632 = vmax.f32 %v630, 1e-24
        %v633 = vrsqrt.pop %v631
        %v634 = vmul.f32 %v633, %v631
        %v635 = vmul.f32 %v634, %v633
        %v636 = vmul.f32 0.5, %v635
        %v637 = vsub.f32 1.5, %v636
        %v638 = vmul.f32 %v633, %v637
        %vm639 = vweird.f32 %v631
        %vm640 = vweird.f32 %v633
        %vm641 = vmor %vm639, %vm640
        %v642 = vsel %vm641, %v633, %v638
        %v643 = vrsqrt.pop %v632
        %v644 = vmul.f32 %v643, %v632
        %v645 = vmul.f32 %v644, %v643
        %v646 = vmul.f32 0.5, %v645
        %v647 = vsub.f32 1.5, %v646
        %v648 = vmul.f32 %v643, %v647
        %vm649 = vweird.f32 %v632
        %vm650 = vweird.f32 %v643
        %vm651 = vmor %vm649, %vm650
        %v652 = vsel %vm651, %v643, %v648
        %v653 = vmul.f32 %v599, %v551
        %v654 = vmul.f32 %v600, %v552
        %v655 = vmul.f32 %v601, %v559
        %v656 = vmul.f32 %v602, %v560
        %v659 = vrot.slane %v655, 5
        %v660 = vrot.slane %v659, 4
        %v661 = vrot.slane %v656, 5
        %v662 = vrot.slane %v661, 4
        %v665 = vadd.f32 %v653, %v660
        %v666 = vadd.f32 %v654, %v662
        %v667 = vmul.f32 %v603, %v565
        %v668 = vmul.f32 %v604, %v566
        %v671 = vrot.slane %v667, 6
        %v672 = vrot.slane %v671, 4
        %v673 = vrot.slane %v668, 6
        %v674 = vrot.slane %v673, 4
        %v677 = vadd.f32 %v665, %v672
        %v678 = vadd.f32 %v666, %v674
        %v679 = vmul.f32 %v677, %v642
        %v680 = vmul.f32 %v678, %v652
        %v681 = vmul.f32 %v567, %v583
        %v682 = vmul.f32 %v568, %v584
        %v683 = vmul.f32 %v575, %v591
        %v684 = vmul.f32 %v576, %v592
        %v687 = vrot.slane %v683, 5
        %v688 = vrot.slane %v687, 4
        %v689 = vrot.slane %v684, 5
        %v690 = vrot.slane %v689, 4
        %v693 = vadd.f32 %v681, %v688
        %v694 = vadd.f32 %v682, %v690
        %v695 = vmul.f32 %v581, %v597
        %v696 = vmul.f32 %v582, %v598
        %v699 = vrot.slane %v695, 6
        %v700 = vrot.slane %v699, 4
        %v701 = vrot.slane %v696, 6
        %v702 = vrot.slane %v701, 4
        %v705 = vadd.f32 %v693, %v700
        %v706 = vadd.f32 %v694, %v702
        %v707 = vmax.f32 %v679, -0.9999999
        %v708 = vmax.f32 %v680, -0.9999999
        %v709 = vmin.f32 %v707, 0.9999999
        %v710 = vmin.f32 %v708, 0.9999999
        %v711 = vand.u32 2147483647, %v709
        %v712 = vand.u32 2147483647, %v710
        %vm713 = vcmp.le.f32.partialorder %v711, 0.5
        %vm714 = vcmp.le.f32.partialorder %v712, 0.5
        %v715 = vsub.f32 1.0, %v711
        %v716 = vsub.f32 1.0, %v712
        %v717 = vmul.f32 %v715, 0.5
        %v718 = vmul.f32 %v716, 0.5
        %v719 = vmul.f32 %v709, %v709
        %v720 = vmul.f32 %v710, %v710
        %v721 = vsel %vm713, %v719, %v717
        %v722 = vsel %vm714, %v720, %v718
        %v723 = vrsqrt.pop %v717
        %v724 = vmul.f32 %v723, %v717
        %v725 = vmul.f32 %v724, %v723
        %v726 = vmul.f32 0.5, %v725
        %v727 = vsub.f32 1.5, %v726
        %v728 = vmul.f32 %v723, %v727
        %v729 = vmul.f32 %v717, %v728
        %vm730 = vcmp.eq.f32.partialorder %v717, inf
        %v731 = vsel %vm730, %v717, %v729
        %vm732 = vcmp.eq.f32.partialorder %v717, 0.0
        %v733 = vand.u32 %v717, 2147483648
        %v734 = vsel %vm732, %v733, %v731
        %v735 = vrsqrt.pop %v718
        %v736 = vmul.f32 %v735, %v718
        %v737 = vmul.f32 %v736, %v735
        %v738 = vmul.f32 0.5, %v737
        %v739 = vsub.f32 1.5, %v738
        %v740 = vmul.f32 %v735, %v739
        %v741 = vmul.f32 %v718, %v740
        %vm742 = vcmp.eq.f32.partialorder %v718, inf
        %v743 = vsel %vm742, %v718, %v741
        %vm744 = vcmp.eq.f32.partialorder %v718, 0.0
        %v745 = vand.u32 %v718, 2147483648
        %v746 = vsel %vm744, %v745, %v743
        %v747 = vsel %vm713, %v709, %v734
        %v748 = vsel %vm714, %v710, %v746
        %v749 = vmul.f32 %v721, 0.0421632
        %v750 = vmul.f32 %v722, 0.0421632
        %v751 = vadd.f32 %v749, 0.024181312
        %v752 = vadd.f32 %v750, 0.024181312
        %v753 = vmul.f32 %v751, %v721
        %v754 = vmul.f32 %v752, %v722
        %v755 = vadd.f32 %v753, 0.045470025
        %v756 = vadd.f32 %v754, 0.045470025
        %v757 = vmul.f32 %v755, %v721
        %v758 = vmul.f32 %v756, %v722
        %v759 = vadd.f32 %v757, 0.074953005
        %v760 = vadd.f32 %v758, 0.074953005
        %v761 = vmul.f32 %v759, %v721
        %v762 = vmul.f32 %v760, %v722
        %v763 = vadd.f32 %v761, 0.16666752
        %v764 = vadd.f32 %v762, 0.16666752
        %v765 = vmul.f32 %v747, %v721
        %v766 = vmul.f32 %v748, %v722
        %v767 = vmul.f32 %v765, %v763
        %v768 = vmul.f32 %v766, %v764
        %v769 = vadd.f32 %v747, %v767
        %v770 = vadd.f32 %v748, %v768
        %v771 = vsub.f32 1.5707964, %v769
        %v772 = vsub.f32 1.5707964, %v770
        %v773 = vmul.f32 %v769, 2.0
        %v774 = vmul.f32 %v770, 2.0
        %vm775 = vcmp.gt.f32.partialorder %v709, 0.0
        %vm776 = vcmp.gt.f32.partialorder %v710, 0.0
        %v777 = vsub.f32 3.1415927, %v773
        %v778 = vsub.f32 3.1415927, %v774
        %v779 = vsel %vm775, %v773, %v777
        %v780 = vsel %vm776, %v774, %v778
        %v781 = vsel %vm713, %v771, %v779
        %v782 = vsel %vm714, %v772, %v780
        %v783 = vmax.f32 %v705, -0.9999999
        %v784 = vmax.f32 %v706, -0.9999999
        %v785 = vmin.f32 %v783, 0.9999999
        %v786 = vmin.f32 %v784, 0.9999999
        %v787 = vand.u32 2147483647, %v785
        %v788 = vand.u32 2147483647, %v786
        %vm789 = vcmp.le.f32.partialorder %v787, 0.5
        %vm790 = vcmp.le.f32.partialorder %v788, 0.5
        %v791 = vsub.f32 1.0, %v787
        %v792 = vsub.f32 1.0, %v788
        %v793 = vmul.f32 %v791, 0.5
        %v794 = vmul.f32 %v792, 0.5
        %v795 = vmul.f32 %v785, %v785
        %v796 = vmul.f32 %v786, %v786
        %v797 = vsel %vm789, %v795, %v793
        %v798 = vsel %vm790, %v796, %v794
        %v799 = vrsqrt.pop %v793
        %v800 = vmul.f32 %v799, %v793
        %v801 = vmul.f32 %v800, %v799
        %v802 = vmul.f32 0.5, %v801
        %v803 = vsub.f32 1.5, %v802
        %v804 = vmul.f32 %v799, %v803
        %v805 = vmul.f32 %v793, %v804
        %vm806 = vcmp.eq.f32.partialorder %v793, inf
        %v807 = vsel %vm806, %v793, %v805
        %vm808 = vcmp.eq.f32.partialorder %v793, 0.0
        %v809 = vand.u32 %v793, 2147483648
        %v810 = vsel %vm808, %v809, %v807
        %v811 = vrsqrt.pop %v794
        %v812 = vmul.f32 %v811, %v794
        %v813 = vmul.f32 %v812, %v811
        %v814 = vmul.f32 0.5, %v813
        %v815 = vsub.f32 1.5, %v814
        %v816 = vmul.f32 %v811, %v815
        %v817 = vmul.f32 %v794, %v816
        %vm818 = vcmp.eq.f32.partialorder %v794, inf
        %v819 = vsel %vm818, %v794, %v817
        %vm820 = vcmp.eq.f32.partialorder %v794, 0.0
        %v821 = vand.u32 %v794, 2147483648
        %v822 = vsel %vm820, %v821, %v819
        %v823 = vsel %vm789, %v785, %v810
        %v824 = vsel %vm790, %v786, %v822
        %v825 = vmul.f32 %v797, 0.0421632
        %v826 = vmul.f32 %v798, 0.0421632
        %v827 = vadd.f32 %v825, 0.024181312
        %v828 = vadd.f32 %v826, 0.024181312
        %v829 = vmul.f32 %v827, %v797
        %v830 = vmul.f32 %v828, %v798
        %v831 = vadd.f32 %v829, 0.045470025
        %v832 = vadd.f32 %v830, 0.045470025
        %v833 = vmul.f32 %v831, %v797
        %v834 = vmul.f32 %v832, %v798
        %v835 = vadd.f32 %v833, 0.074953005
        %v836 = vadd.f32 %v834, 0.074953005
        %v837 = vmul.f32 %v835, %v797
        %v838 = vmul.f32 %v836, %v798
        %v839 = vadd.f32 %v837, 0.16666752
        %v840 = vadd.f32 %v838, 0.16666752
        %v841 = vmul.f32 %v823, %v797
        %v842 = vmul.f32 %v824, %v798
        %v843 = vmul.f32 %v841, %v839
        %v844 = vmul.f32 %v842, %v840
        %v845 = vadd.f32 %v823, %v843
        %v846 = vadd.f32 %v824, %v844
        %v847 = vsub.f32 1.5707964, %v845
        %v848 = vsub.f32 1.5707964, %v846
        %v849 = vmul.f32 %v845, 2.0
        %v850 = vmul.f32 %v846, 2.0
        %vm851 = vcmp.gt.f32.partialorder %v785, 0.0
        %vm852 = vcmp.gt.f32.partialorder %v786, 0.0
        %v853 = vsub.f32 3.1415927, %v849
        %v854 = vsub.f32 3.1415927, %v850
        %v855 = vsel %vm851, %v849, %v853
        %v856 = vsel %vm852, %v850, %v854
        %v857 = vsel %vm789, %v847, %v855
        %v858 = vsel %vm790, %v848, %v856
        %v859 = vmul.f32 %v857, 0.5
        %v860 = vmul.f32 %v858, 0.5
        %v861 = vmul.f32 %v551, %v567
        %v862 = vmul.f32 %v552, %v568
        %v863 = vmul.f32 %v559, %v575
        %v864 = vmul.f32 %v560, %v576
        %v867 = vrot.slane %v863, 5
        %v868 = vrot.slane %v867, 4
        %v869 = vrot.slane %v864, 5
        %v870 = vrot.slane %v869, 4
        %v873 = vadd.f32 %v861, %v868
        %v874 = vadd.f32 %v862, %v870
        %v875 = vmul.f32 %v565, %v581
        %v876 = vmul.f32 %v566, %v582
        %v879 = vrot.slane %v875, 6
        %v880 = vrot.slane %v879, 4
        %v881 = vrot.slane %v876, 6
        %v882 = vrot.slane %v881, 4
        %v885 = vadd.f32 %v873, %v880
        %v886 = vadd.f32 %v874, %v882
        %v887 = vmul.f32 %v373, %v405
        %v888 = vmul.f32 %v374, %v406
        %v889 = vmul.f32 %v373, %v408
        %v890 = vmul.f32 %v374, %v409
        %v893 = vrot.slane %v889, 5
        %v894 = vrot.slane %v893, 4
        %v895 = vrot.slane %v890, 5
        %v896 = vrot.slane %v895, 4
        %v899 = vadd.f32 %v887, %v894
        %v900 = vadd.f32 %v888, %v896
        %v901 = vmul.f32 %v373, %v411
        %v902 = vmul.f32 %v374, %v412
        %v905 = vrot.slane %v901, 6
        %v906 = vrot.slane %v905, 4
        %v907 = vrot.slane %v902, 6
        %v908 = vrot.slane %v907, 4
        %v911 = vadd.f32 %v899, %v906
        %v912 = vadd.f32 %v900, %v908
        %vm913 = vcmp.gt.f32.partialorder %v885, 0.0
        %vm914 = vcmp.gt.f32.partialorder %v886, 0.0
        %vm915 = vcmp.gt.f32.partialorder %v911, 0.0
        %vm916 = vcmp.gt.f32.partialorder %v912, 0.0
        %vm917 = vmand %vm913, %vm915
        %vm918 = vmand %vm914, %vm916
        %v919 = vsel %vm917, %v885, 0.0
        %v920 = vsel %vm918, %v886, 0.0
        %v921 = vmax.f32 %v457, 1e-12
        %v922 = vmax.f32 %v458, 1e-12
        %v923 = vrcp.pop %v921
        %v924 = vrcp.pop %v922
        %v925 = vmul.f32 %v919, %v923
        %v926 = vmul.f32 %v920, %v924
        %v927 = vmul.f32 %v781, 9.656592
        %v928 = vmul.f32 %v782, 9.656592
        %v929 = vlaneseq
        %v930 = vshrl.u32 %v929, 7
        %v931 = vadd.s32 %v930, 8
        %v932 = vcvt.s32.f32 %v930
        %v933 = vcvt.s32.f32 %v931
        %v936 = vperm.slane %v927, 0
        %v937 = vperm.slane %v927, 4
        %v938 = vperm.slane %v928, 0
        %v939 = vperm.slane %v928, 4
        %v944 = vperm.slane %v936, 0
        %v945 = vperm.slane %v937, 0
        %v946 = vperm.slane %v938, 0
        %v947 = vperm.slane %v939, 0
        %v948 = vsub.f32 %v932, %v944
        %v949 = vsub.f32 %v932, %v945
        %v950 = vsub.f32 %v932, %v946
        %v951 = vsub.f32 %v932, %v947
        %v952 = vsub.f32 %v933, %v944
        %v953 = vsub.f32 %v933, %v945
        %v954 = vsub.f32 %v933, %v946
        %v955 = vsub.f32 %v933, %v947
        %v956 = vand.u32 2147483647, %v948
        %v957 = vand.u32 2147483647, %v949
        %v958 = vand.u32 2147483647, %v950
        %v959 = vand.u32 2147483647, %v951
        %v960 = vand.u32 2147483647, %v952
        %v961 = vand.u32 2147483647, %v953
        %v962 = vand.u32 2147483647, %v954
        %v963 = vand.u32 2147483647, %v955
        %v964 = vsub.f32 1.0, %v956
        %v965 = vsub.f32 1.0, %v957
        %v966 = vsub.f32 1.0, %v958
        %v967 = vsub.f32 1.0, %v959
        %v968 = vsub.f32 1.0, %v960
        %v969 = vsub.f32 1.0, %v961
        %v970 = vsub.f32 1.0, %v962
        %v971 = vsub.f32 1.0, %v963
        %v972 = vmax.f32 %v964, 0.0
        %v973 = vmax.f32 %v965, 0.0
        %v974 = vmax.f32 %v966, 0.0
        %v975 = vmax.f32 %v967, 0.0
        %v976 = vmax.f32 %v968, 0.0
        %v977 = vmax.f32 %v969, 0.0
        %v978 = vmax.f32 %v970, 0.0
        %v979 = vmax.f32 %v971, 0.0
        %v982 = vperm.slane %v375, 0
        %v983 = vperm.slane %v375, 4
        %v984 = vperm.slane %v376, 0
        %v985 = vperm.slane %v376, 4
        %v990 = vperm.slane %v982, 0
        %v991 = vperm.slane %v983, 0
        %v992 = vperm.slane %v984, 0
        %v993 = vperm.slane %v985, 0
        %v994 = vmul.f32 %v990, %v972
        %v995 = vmul.f32 %v991, %v973
        %v996 = vmul.f32 %v992, %v974
        %v997 = vmul.f32 %v993, %v975
        %v998 = vmul.f32 %v990, %v976
        %v999 = vmul.f32 %v991, %v977
        %v1000 = vmul.f32 %v992, %v978
        %v1001 = vmul.f32 %v993, %v979
        %v1002 = vperm.slane %v375, 1
        %v1003 = vperm.slane %v375, 5
        %v1004 = vperm.slane %v376, 1
        %v1005 = vperm.slane %v376, 5
        %v1010 = vperm.slane %v1002, 1
        %v1011 = vperm.slane %v1003, 1
        %v1012 = vperm.slane %v1004, 1
        %v1013 = vperm.slane %v1005, 1
        %v1014 = vmul.f32 %v1010, %v972
        %v1015 = vmul.f32 %v1011, %v973
        %v1016 = vmul.f32 %v1012, %v974
        %v1017 = vmul.f32 %v1013, %v975
        %v1018 = vmul.f32 %v1010, %v976
        %v1019 = vmul.f32 %v1011, %v977
        %v1020 = vmul.f32 %v1012, %v978
        %v1021 = vmul.f32 %v1013, %v979
        %v1022 = vperm.slane %v375, 2
        %v1023 = vperm.slane %v375, 6
        %v1024 = vperm.slane %v376, 2
        %v1025 = vperm.slane %v376, 6
        %v1030 = vperm.slane %v1022, 2
        %v1031 = vperm.slane %v1023, 2
        %v1032 = vperm.slane %v1024, 2
        %v1033 = vperm.slane %v1025, 2
        %v1034 = vmul.f32 %v1030, %v972
        %v1035 = vmul.f32 %v1031, %v973
        %v1036 = vmul.f32 %v1032, %v974
        %v1037 = vmul.f32 %v1033, %v975
        %v1038 = vmul.f32 %v1030, %v976
        %v1039 = vmul.f32 %v1031, %v977
        %v1040 = vmul.f32 %v1032, %v978
        %v1041 = vmul.f32 %v1033, %v979
        %v1042 = vperm.slane %v375, 3
        %v1043 = vperm.slane %v375, 7
        %v1044 = vperm.slane %v376, 3
        %v1045 = vperm.slane %v376, 7
        %v1050 = vperm.slane %v1042, 3
        %v1051 = vperm.slane %v1043, 3
        %v1052 = vperm.slane %v1044, 3
        %v1053 = vperm.slane %v1045, 3
        %v1054 = vmul.f32 %v1050, %v972
        %v1055 = vmul.f32 %v1051, %v973
        %v1056 = vmul.f32 %v1052, %v974
        %v1057 = vmul.f32 %v1053, %v975
        %v1058 = vmul.f32 %v1050, %v976
        %v1059 = vmul.f32 %v1051, %v977
        %v1060 = vmul.f32 %v1052, %v978
        %v1061 = vmul.f32 %v1053, %v979
        %v1062 = vpack.c.bf16 %v998, %v994
        %v1063 = vpack.c.bf16 %v999, %v995
        %v1064 = vpack.c.bf16 %v1000, %v996
        %v1065 = vpack.c.bf16 %v1001, %v997
        %v1066 = vpack.c.bf16 %v1018, %v1014
        %v1067 = vpack.c.bf16 %v1019, %v1015
        %v1068 = vpack.c.bf16 %v1020, %v1016
        %v1069 = vpack.c.bf16 %v1021, %v1017
        %v1070 = vpack.c.bf16 %v1038, %v1034
        %v1071 = vpack.c.bf16 %v1039, %v1035
        %v1072 = vpack.c.bf16 %v1040, %v1036
        %v1073 = vpack.c.bf16 %v1041, %v1037
        %v1074 = vpack.c.bf16 %v1058, %v1054
        %v1075 = vpack.c.bf16 %v1059, %v1055
        %v1076 = vpack.c.bf16 %v1060, %v1056
        %v1077 = vpack.c.bf16 %v1061, %v1057
        %v1078 = vld [vmem:[%s349] sm:$0xf]
        %v1079 = vld [vmem:[%s349 + $0x4] sm:$0xf]
        %v1080 = vld [vmem:[%s349 + $0x8] sm:$0xf]
        %v1081 = vld [vmem:[%s349 + $0xc] sm:$0xf]
        %v1082 = vld [vmem:[%s349 + $0x10] sm:$0xf]
        %v1083 = vld [vmem:[%s349 + $0x14] sm:$0xf]
        %v1090 = vunpack.c.l.b16 %v1078
        %v1091 = vunpack.c.l.b16 %v1079
        %v1092 = vunpack.c.l.b16 %v1080
        %v1093 = vunpack.c.l.b16 %v1081
        %v1094 = vunpack.c.l.b16 %v1082
        %v1095 = vunpack.c.l.b16 %v1083
        %v1096 = vpack.c.b16 %v1091, %v1090
        %v1097 = vpack.c.b16 %v1093, %v1092
        %v1098 = vpack.c.b16 %v1095, %v1094
        %vm1099 = vcmask 523264
        %v1101 = vsel %vm1099, %v1096, 0
        %v1104 = vsel %vm1099, %v1097, 0
        %v1107 = vsel %vm1099, %v1098, 0
        %1109 = vmatpush.bf16.msra.mxu0 0
        %1110 = vmatpush.bf16.msra.mxu0 0
        %1111 = vmatpush.bf16.msra.mxu0 0
        %1112 = vmatpush.bf16.msra.mxu0 0
        %1113 = vmatpush.bf16.msra.mxu0 %v1074
        %1114 = vmatpush.bf16.msra.mxu0 %v1070
        %1115 = vmatpush.bf16.msra.mxu0 %v1066
        %1116 = vmatpush.bf16.msra.mxu0 %v1062
        %1117 = vmatmul.bf16.gmra.mxu0 %v1101
        %v1118 = vpop.f32.mrf.mxu0
        %v1119 = vadd.f32 0.0, %v1118
        %v1120 = vpop.f32.mrf.mxu0
        %v1121 = vadd.f32 0.0, %v1120
        %1122 = vmatmul.bf16.gmra.mxu0 %v1104
        %v1123 = vpop.f32.mrf.mxu0
        %v1124 = vadd.f32 0.0, %v1123
        %v1125 = vpop.f32.mrf.mxu0
        %v1126 = vadd.f32 0.0, %v1125
        %1127 = vmatmul.bf16.gmra.mxu0 %v1107
        %v1128 = vpop.f32.mrf.mxu0
        %v1129 = vadd.f32 0.0, %v1128
        %v1130 = vpop.f32.mrf.mxu0
        %v1131 = vadd.f32 0.0, %v1130
        %1132 = vdwg.mxu0
        %1133 = vmatpush.bf16.msra.mxu0 0
        %1134 = vmatpush.bf16.msra.mxu0 0
        %1135 = vmatpush.bf16.msra.mxu0 0
        %1136 = vmatpush.bf16.msra.mxu0 0
        %1137 = vmatpush.bf16.msra.mxu0 %v1075
        %1138 = vmatpush.bf16.msra.mxu0 %v1071
        %1139 = vmatpush.bf16.msra.mxu0 %v1067
        %1140 = vmatpush.bf16.msra.mxu0 %v1063
        %1141 = vmatmul.bf16.gmra.mxu0 %v1101
        %v1142 = vpop.f32.mrf.mxu0
        %v1143 = vadd.f32 0.0, %v1142
        %v1144 = vpop.f32.mrf.mxu0
        %v1145 = vadd.f32 0.0, %v1144
        %1146 = vmatmul.bf16.gmra.mxu0 %v1104
        %v1147 = vpop.f32.mrf.mxu0
        %v1148 = vadd.f32 0.0, %v1147
        %v1149 = vpop.f32.mrf.mxu0
        %v1150 = vadd.f32 0.0, %v1149
        %1151 = vmatmul.bf16.gmra.mxu0 %v1107
        %v1152 = vpop.f32.mrf.mxu0
        %v1153 = vadd.f32 0.0, %v1152
        %v1154 = vpop.f32.mrf.mxu0
        %v1155 = vadd.f32 0.0, %v1154
        %1156 = vdwg.mxu0
        %1157 = vmatpush.bf16.msra.mxu0 0
        %1158 = vmatpush.bf16.msra.mxu0 0
        %1159 = vmatpush.bf16.msra.mxu0 0
        %1160 = vmatpush.bf16.msra.mxu0 0
        %1161 = vmatpush.bf16.msra.mxu0 %v1076
        %1162 = vmatpush.bf16.msra.mxu0 %v1072
        %1163 = vmatpush.bf16.msra.mxu0 %v1068
        %1164 = vmatpush.bf16.msra.mxu0 %v1064
        %1165 = vmatmul.bf16.gmra.mxu0 %v1101
        %v1166 = vpop.f32.mrf.mxu0
        %v1167 = vadd.f32 0.0, %v1166
        %v1168 = vpop.f32.mrf.mxu0
        %v1169 = vadd.f32 0.0, %v1168
        %1170 = vmatmul.bf16.gmra.mxu0 %v1104
        %v1171 = vpop.f32.mrf.mxu0
        %v1172 = vadd.f32 0.0, %v1171
        %v1173 = vpop.f32.mrf.mxu0
        %v1174 = vadd.f32 0.0, %v1173
        %1175 = vmatmul.bf16.gmra.mxu0 %v1107
        %v1176 = vpop.f32.mrf.mxu0
        %v1177 = vadd.f32 0.0, %v1176
        %v1178 = vpop.f32.mrf.mxu0
        %v1179 = vadd.f32 0.0, %v1178
        %1180 = vdwg.mxu0
        %1181 = vmatpush.bf16.msra.mxu0 0
        %1182 = vmatpush.bf16.msra.mxu0 0
        %1183 = vmatpush.bf16.msra.mxu0 0
        %1184 = vmatpush.bf16.msra.mxu0 0
        %1185 = vmatpush.bf16.msra.mxu0 %v1077
        %1186 = vmatpush.bf16.msra.mxu0 %v1073
        %1187 = vmatpush.bf16.msra.mxu0 %v1069
        %1188 = vmatpush.bf16.msra.mxu0 %v1065
        %1189 = vmatmul.bf16.gmra.mxu0 %v1101
        %v1190 = vpop.f32.mrf.mxu0
        %v1191 = vadd.f32 0.0, %v1190
        %v1192 = vpop.f32.mrf.mxu0
        %v1193 = vadd.f32 0.0, %v1192
        %1194 = vmatmul.bf16.gmra.mxu0 %v1104
        %v1195 = vpop.f32.mrf.mxu0
        %v1196 = vadd.f32 0.0, %v1195
        %v1197 = vpop.f32.mrf.mxu0
        %v1198 = vadd.f32 0.0, %v1197
        %1199 = vmatmul.bf16.gmra.mxu0 %v1107
        %v1200 = vpop.f32.mrf.mxu0
        %v1201 = vadd.f32 0.0, %v1200
        %v1202 = vpop.f32.mrf.mxu0
        %v1203 = vadd.f32 0.0, %v1202
        %1204 = vdwg.mxu0
        %v1205 = vmul.f32 %v859, 9.656592
        %v1206 = vmul.f32 %v860, 9.656592
        %v1209 = vperm.slane %v1205, 0
        %v1210 = vperm.slane %v1205, 4
        %v1211 = vperm.slane %v1206, 0
        %v1212 = vperm.slane %v1206, 4
        %v1217 = vperm.slane %v1209, 0
        %v1218 = vperm.slane %v1210, 0
        %v1219 = vperm.slane %v1211, 0
        %v1220 = vperm.slane %v1212, 0
        %v1221 = vsub.f32 %v932, %v1217
        %v1222 = vsub.f32 %v932, %v1218
        %v1223 = vsub.f32 %v932, %v1219
        %v1224 = vsub.f32 %v932, %v1220
        %v1225 = vsub.f32 %v933, %v1217
        %v1226 = vsub.f32 %v933, %v1218
        %v1227 = vsub.f32 %v933, %v1219
        %v1228 = vsub.f32 %v933, %v1220
        %v1229 = vand.u32 2147483647, %v1221
        %v1230 = vand.u32 2147483647, %v1222
        %v1231 = vand.u32 2147483647, %v1223
        %v1232 = vand.u32 2147483647, %v1224
        %v1233 = vand.u32 2147483647, %v1225
        %v1234 = vand.u32 2147483647, %v1226
        %v1235 = vand.u32 2147483647, %v1227
        %v1236 = vand.u32 2147483647, %v1228
        %v1237 = vsub.f32 1.0, %v1229
        %v1238 = vsub.f32 1.0, %v1230
        %v1239 = vsub.f32 1.0, %v1231
        %v1240 = vsub.f32 1.0, %v1232
        %v1241 = vsub.f32 1.0, %v1233
        %v1242 = vsub.f32 1.0, %v1234
        %v1243 = vsub.f32 1.0, %v1235
        %v1244 = vsub.f32 1.0, %v1236
        %v1245 = vmax.f32 %v1237, 0.0
        %v1246 = vmax.f32 %v1238, 0.0
        %v1247 = vmax.f32 %v1239, 0.0
        %v1248 = vmax.f32 %v1240, 0.0
        %v1249 = vmax.f32 %v1241, 0.0
        %v1250 = vmax.f32 %v1242, 0.0
        %v1251 = vmax.f32 %v1243, 0.0
        %v1252 = vmax.f32 %v1244, 0.0
        %v1253 = vmul.f32 %v1119, %v1245
        %v1254 = vmul.f32 %v1143, %v1246
        %v1255 = vmul.f32 %v1167, %v1247
        %v1256 = vmul.f32 %v1191, %v1248
        %v1257 = vmul.f32 %v1121, %v1249
        %v1258 = vmul.f32 %v1145, %v1250
        %v1259 = vmul.f32 %v1169, %v1251
        %v1260 = vmul.f32 %v1193, %v1252
        %v1261 = vadd.f32 %v1253, %v1257
        %v1262 = vrot.slane %v1261, 4
        %v1263 = vadd.f32 %v1261, %v1262
        %v1264 = vrot.slane %v1263, 2
        %v1265 = vadd.f32 %v1263, %v1264
        %v1266 = vrot.slane %v1265, 1
        %v1267 = vadd.f32 %v1265, %v1266
        %v1268 = vadd.f32 %v1254, %v1258
        %v1269 = vrot.slane %v1268, 4
        %v1270 = vadd.f32 %v1268, %v1269
        %v1271 = vrot.slane %v1270, 2
        %v1272 = vadd.f32 %v1270, %v1271
        %v1273 = vrot.slane %v1272, 1
        %v1274 = vadd.f32 %v1272, %v1273
        %v1275 = vadd.f32 %v1255, %v1259
        %v1276 = vrot.slane %v1275, 4
        %v1277 = vadd.f32 %v1275, %v1276
        %v1278 = vrot.slane %v1277, 2
        %v1279 = vadd.f32 %v1277, %v1278
        %v1280 = vrot.slane %v1279, 1
        %v1281 = vadd.f32 %v1279, %v1280
        %v1282 = vadd.f32 %v1256, %v1260
        %v1283 = vrot.slane %v1282, 4
        %v1284 = vadd.f32 %v1282, %v1283
        %v1285 = vrot.slane %v1284, 2
        %v1286 = vadd.f32 %v1284, %v1285
        %v1287 = vrot.slane %v1286, 1
        %v1288 = vadd.f32 %v1286, %v1287
        %v1289 = vstv %s384
        %v1290 = vmul.f32 %v925, %v1289
        %v1291 = vmul.f32 %v926, %v1289
        %v1294 = vperm.slane %v1290, 0
        %v1295 = vperm.slane %v1290, 4
        %v1296 = vperm.slane %v1291, 0
        %v1297 = vperm.slane %v1291, 4
        %v1302 = vmul.f32 %v1267, %v1294
        %v1303 = vmul.f32 %v1274, %v1295
        %v1304 = vmul.f32 %v1281, %v1296
        %v1305 = vmul.f32 %v1288, %v1297
        %v1306 = vmul.f32 %v1124, %v1245
        %v1307 = vmul.f32 %v1148, %v1246
        %v1308 = vmul.f32 %v1172, %v1247
        %v1309 = vmul.f32 %v1196, %v1248
        %v1310 = vmul.f32 %v1126, %v1249
        %v1311 = vmul.f32 %v1150, %v1250
        %v1312 = vmul.f32 %v1174, %v1251
        %v1313 = vmul.f32 %v1198, %v1252
        %v1314 = vadd.f32 %v1306, %v1310
        %v1315 = vrot.slane %v1314, 4
        %v1316 = vadd.f32 %v1314, %v1315
        %v1317 = vrot.slane %v1316, 2
        %v1318 = vadd.f32 %v1316, %v1317
        %v1319 = vrot.slane %v1318, 1
        %v1320 = vadd.f32 %v1318, %v1319
        %v1321 = vadd.f32 %v1307, %v1311
        %v1322 = vrot.slane %v1321, 4
        %v1323 = vadd.f32 %v1321, %v1322
        %v1324 = vrot.slane %v1323, 2
        %v1325 = vadd.f32 %v1323, %v1324
        %v1326 = vrot.slane %v1325, 1
        %v1327 = vadd.f32 %v1325, %v1326
        %v1328 = vadd.f32 %v1308, %v1312
        %v1329 = vrot.slane %v1328, 4
        %v1330 = vadd.f32 %v1328, %v1329
        %v1331 = vrot.slane %v1330, 2
        %v1332 = vadd.f32 %v1330, %v1331
        %v1333 = vrot.slane %v1332, 1
        %v1334 = vadd.f32 %v1332, %v1333
        %v1335 = vadd.f32 %v1309, %v1313
        %v1336 = vrot.slane %v1335, 4
        %v1337 = vadd.f32 %v1335, %v1336
        %v1338 = vrot.slane %v1337, 2
        %v1339 = vadd.f32 %v1337, %v1338
        %v1340 = vrot.slane %v1339, 1
        %v1341 = vadd.f32 %v1339, %v1340
        %v1342 = vstv %s386
        %v1343 = vmul.f32 %v925, %v1342
        %v1344 = vmul.f32 %v926, %v1342
        %v1347 = vperm.slane %v1343, 0
        %v1348 = vperm.slane %v1343, 4
        %v1349 = vperm.slane %v1344, 0
        %v1350 = vperm.slane %v1344, 4
        %v1355 = vmul.f32 %v1320, %v1347
        %v1356 = vmul.f32 %v1327, %v1348
        %v1357 = vmul.f32 %v1334, %v1349
        %v1358 = vmul.f32 %v1341, %v1350
        %v1359 = vmul.f32 %v1129, %v1245
        %v1360 = vmul.f32 %v1153, %v1246
        %v1361 = vmul.f32 %v1177, %v1247
        %v1362 = vmul.f32 %v1201, %v1248
        %v1363 = vmul.f32 %v1131, %v1249
        %v1364 = vmul.f32 %v1155, %v1250
        %v1365 = vmul.f32 %v1179, %v1251
        %v1366 = vmul.f32 %v1203, %v1252
        %v1367 = vadd.f32 %v1359, %v1363
        %v1368 = vrot.slane %v1367, 4
        %v1369 = vadd.f32 %v1367, %v1368
        %v1370 = vrot.slane %v1369, 2
        %v1371 = vadd.f32 %v1369, %v1370
        %v1372 = vrot.slane %v1371, 1
        %v1373 = vadd.f32 %v1371, %v1372
        %v1374 = vadd.f32 %v1360, %v1364
        %v1375 = vrot.slane %v1374, 4
        %v1376 = vadd.f32 %v1374, %v1375
        %v1377 = vrot.slane %v1376, 2
        %v1378 = vadd.f32 %v1376, %v1377
        %v1379 = vrot.slane %v1378, 1
        %v1380 = vadd.f32 %v1378, %v1379
        %v1381 = vadd.f32 %v1361, %v1365
        %v1382 = vrot.slane %v1381, 4
        %v1383 = vadd.f32 %v1381, %v1382
        %v1384 = vrot.slane %v1383, 2
        %v1385 = vadd.f32 %v1383, %v1384
        %v1386 = vrot.slane %v1385, 1
        %v1387 = vadd.f32 %v1385, %v1386
        %v1388 = vadd.f32 %v1362, %v1366
        %v1389 = vrot.slane %v1388, 4
        %v1390 = vadd.f32 %v1388, %v1389
        %v1391 = vrot.slane %v1390, 2
        %v1392 = vadd.f32 %v1390, %v1391
        %v1393 = vrot.slane %v1392, 1
        %v1394 = vadd.f32 %v1392, %v1393
        %v1395 = vstv %s388
        %v1396 = vmul.f32 %v925, %v1395
        %v1397 = vmul.f32 %v926, %v1395
        %v1400 = vperm.slane %v1396, 0
        %v1401 = vperm.slane %v1396, 4
        %v1402 = vperm.slane %v1397, 0
        %v1403 = vperm.slane %v1397, 4
        %v1408 = vmul.f32 %v1373, %v1400
        %v1409 = vmul.f32 %v1380, %v1401
        %v1410 = vmul.f32 %v1387, %v1402
        %v1411 = vmul.f32 %v1394, %v1403
        %v1416 = vrot.slane %v1355, 7
        %v1417 = vrot.slane %v1356, 7
        %v1418 = vrot.slane %v1357, 7
        %v1419 = vrot.slane %v1358, 7
        %v1428 = vrot.slane %v1408, 6
        %v1429 = vrot.slane %v1409, 6
        %v1430 = vrot.slane %v1410, 6
        %v1431 = vrot.slane %v1411, 6
        %vm1436 = vcmask 1040384
        %v1437 = vsel %vm1436, %v1302, %v1416
        %v1438 = vsel %vm1436, %v1303, %v1417
        %v1439 = vsel %vm1436, %v1304, %v1418
        %v1440 = vsel %vm1436, %v1305, %v1419
        %vm1441 = vcmask 1041408
        %v1442 = vsel %vm1441, %v1437, %v1428
        %v1443 = vsel %vm1441, %v1438, %v1429
        %v1444 = vsel %vm1441, %v1439, %v1430
        %v1445 = vsel %vm1441, %v1440, %v1431
        %v1450 = vrot.slane %v1443, 4
        %v1451 = vrot.slane %v1445, 4
        %vm1452 = vcmask 1043456
        %v1453 = vsel %vm1452, %v1442, %v1450
        %v1454 = vsel %vm1452, %v1444, %v1451
        %1457 = vst [vmem:[%s368] sm:$0x77] %v1453
        %1458 = vst [vmem:[%s368 + $0x8] sm:$0x77] %v1454
        %s1459 = smul.u32 4, %s22
        %p1460 = scmp.lt.s32.totalorder %s21, 1
        %s1461 = scalar_select %p1460, %s21, 1
        %p1462 = scmp.lt.s32.totalorder %s1459, 3
        %s1463 = scalar_select %p1462, %s1459, 3
        %s1464 = smul.addr %s1461, 4
        %s1465 = sadd.s32 %s1463, %s1464
        %s1466 = smul.addr %s1465, 4
        %s1467 = scalar_lea.vmem %s5, %s1466
        // Predicated region
        $region45: #{tpu_custom_call.1} parent=39 // pred_check
          %p1468 = pneg %p180
        $region46: #{tpu_custom_call.1} parent=39 // pred_check_branch
          %1470 = sbr.rel (%p1468) target = $region48
        $region47: #{tpu_custom_call.1} parent=39 // pred_region
          %s1471 = smul.u32 4, %s22
        $region48: #{tpu_custom_call.1} parent=39 // pred_fallthru
          _
      $region40: #{tpu_custom_call.1} parent=5 // pred_fallthru
        _
      %p1472 = scmp.le.s32.totalorder 2, %s12
      // Predicated region
      $region49: #{tpu_custom_call.1} parent=5 // pred_check
        %p1473 = pneg %p1472
      $region50: #{tpu_custom_call.1} parent=5 // pred_check_branch
        %1475 = sbr.rel (%p1473) target = $region52
      $region51: #{tpu_custom_call.1} parent=5 // pred_region
        %s1476 = ssub.s32 %s12, 2
        // Predicated region
        $region53: #{tpu_custom_call.1} parent=51 // pred_check
          %p1477 = pneg %p186
        $region54: #{tpu_custom_call.1} parent=51 // pred_check_branch
          %1479 = sbr.rel (%p1477) target = $region56
        $region55: #{tpu_custom_call.1} parent=51 // pred_region
          %s1480 = smul.u32 4, %s24
          %p1481 = scmp.lt.s32.totalorder %s23, 1
          %s1482 = scalar_select %p1481, %s23, 1
          %p1483 = scmp.lt.s32.totalorder %s1480, 3
          %s1484 = scalar_select %p1483, %s1480, 3
          %s1485 = smul.addr %s1482, 4
          %s1486 = sadd.s32 %s1484, %s1485
          %s1487 = smul.addr %s1486, 4
          %s1488 = scalar_lea.vmem %s5, %s1487
        $region56: #{tpu_custom_call.1} parent=51 // pred_fallthru
          _
      $region52: #{tpu_custom_call.1} parent=5 // pred_fallthru
        _
    $region6: #{tpu_custom_call.1} parent=1 // loop_footer
      %s16 = sadd.s32 1, %s12
    $region7: #{tpu_custom_call.1} parent=1 // loop_footer_branch
      %11 = sbr.rel target = $region3
    $region8: #{tpu_custom_call.1} parent=1 // loop_exit
      _
    %1489 = vsyncpa [#allocation3], 1
    %s1490 = scalar_lea.sflag [#allocation3], 1
    %1491 = vsyncpa %s1490, 1

</llo_original>
